<compile_context>
chip_gen: v7x
topology: tpu7x:2x2x1
jax: 0.10.0
libtpu: 0.0.40
codegen_flags: <defaults>
</compile_context>

<pallas_src>
import functools

import jax
import jax.numpy as jnp
from jax import lax
from jax.experimental import pallas as pl
from jax.experimental.pallas import tpu as pltpu

GN_EPS = 1e-5  # PyTorch GroupNorm default eps


# ----------------------------- static layer plan ----------------------------------

def build_layer_plan(in_channels, out_channels, hidden_dim, upsampling_factor):
    """Static layer descriptors matching Decoder.__init__ (kind, cin, cout)."""
    plan = [("res", in_channels, hidden_dim)]
    for _ in range(upsampling_factor - 1):
        plan.append(("res", hidden_dim, hidden_dim))
        plan.append(("up", hidden_dim, hidden_dim))
    plan.append(("res", hidden_dim, hidden_dim))
    plan.append(("up", hidden_dim, out_channels))
    return tuple(plan)


# ----------------------------- in-kernel building blocks ---------------------------

def _row_shift_down(x):
    """(L, C): row l -> x[l-1]; row 0 -> 0.  XLU roll + one-row mask."""
    rows = lax.broadcasted_iota(jnp.int32, x.shape, 0)
    return jnp.where(rows == 0, jnp.zeros_like(x), pltpu.roll(x, shift=1, axis=0))


def _row_shift_up(x):
    """(L, C): row l -> x[l+1]; row L-1 -> 0."""
    n = x.shape[0]
    rows = lax.broadcasted_iota(jnp.int32, x.shape, 0)
    return jnp.where(rows == n - 1, jnp.zeros_like(x), pltpu.roll(x, shift=n - 1, axis=0))


def _neighbors(h, n_streams, l0):
    """Sequence neighbours in stream-blocked order.

    h is (n_streams * l0, C); row s*l0 + l holds sequence position n_streams*l + s.
    Returns (prev, next): same shape, holding positions -1 / +1 (zero past the ends).
    Only the boundary streams need a sublane roll; all other blocks are aligned slices."""
    n = h.shape[0]
    prev_head = _row_shift_down(h[n - l0:, :])   # stream S-1, shifted by one row
    next_tail = _row_shift_up(h[:l0, :])         # stream 0, shifted by one row
    if n_streams == 1:
        return prev_head, next_tail
    prev = jnp.concatenate([prev_head, h[: n - l0, :]], axis=0)
    nxt = jnp.concatenate([h[l0:, :], next_tail], axis=0)
    return prev, nxt


def _group_norm1(x, gamma, beta):
    """GroupNorm(1, C): per-sample stats over all (L, C) elements, single fused pass (f32)."""
    n = x.shape[0] * x.shape[1]
    s1 = jnp.sum(x, axis=0, keepdims=True)        # sublane reduce first: (1, C)
    s2 = jnp.sum(x * x, axis=0, keepdims=True)    # (1, C)
    mu = jnp.sum(s1, axis=1, keepdims=True) / n       # (1, 1)
    ex2 = jnp.sum(s2, axis=1, keepdims=True) / n      # (1, 1)
    inv = lax.rsqrt(ex2 - mu * mu + GN_EPS)
    scale = inv * gamma                           # (1, C)
    return x * scale + (beta - mu * scale)


# ----------------------------- fused decoder kernel --------------------------------

def _make_decoder_kernel(plan, l0):
    def kernel(x_ref, *refs):
        out_ref = refs[-1]
        params = refs[:-1]
        idx = [0]

        def take():
            v = params[idx[0]][...]
            idx[0] += 1
            return v

        h = x_ref[0].astype(jnp.float32)              # (l0, c_in), channel-last, 1 stream
        n_streams = 1
        for kind, cin, cout in plan:
            prev, nxt = _neighbors(h, n_streams, l0)
            if kind == "res":
                w_taps = take()                       # (3*cin, cout) bf16: [w0; w1; w2]
                aff = take()                          # (3|4, cout) f32: [bias; gamma; beta; (res_b)]
                xcat = jnp.concatenate([prev, h, nxt], axis=1).astype(jnp.bfloat16)
                y = jnp.dot(xcat, w_taps, preferred_element_type=jnp.float32) + aff[0:1]
                y = _group_norm1(y, aff[1:2], aff[2:3])
                if cin != cout:
                    wr = take()                       # (cin, cout) bf16 1x1 residual conv
                    res = jnp.dot(h.astype(jnp.bfloat16), wr,
                                  preferred_element_type=jnp.float32) + aff[3:4]
                else:
                    res = h                           # identity residual (f32)
                h = jnp.maximum(y + res, 0.0)
            else:  # "up": nearest x2 upsample folded into Conv1d(k=3, p=1) via even/odd phases
                w_even = take()                       # (2*cin, cout) bf16: [w0; w1 + w2]
                w_odd = take()                        # (2*cin, cout) bf16: [w0 + w1; w2]
                b = take()                            # (1, cout) f32
                even = jnp.dot(jnp.concatenate([prev, h], axis=1).astype(jnp.bfloat16),
                               w_even, preferred_element_type=jnp.float32) + b
                odd = jnp.dot(jnp.concatenate([h, nxt], axis=1).astype(jnp.bfloat16),
                              w_odd, preferred_element_type=jnp.float32) + b
                # Block-level interleave (aligned sublane concat): stream 2s <- even_s, 2s+1 <- odd_s.
                blocks = []
                for s in range(n_streams):
                    blocks.append(even[s * l0:(s + 1) * l0, :])
                    blocks.append(odd[s * l0:(s + 1) * l0, :])
                h = jnp.concatenate(blocks, axis=0)
                n_streams *= 2

        # Lane-dense store: (c_out, L_out); columns are in stream-blocked order (fixed in wrapper).
        out_ref[0] = jnp.transpose(h).astype(out_ref.dtype)

    return kernel


# ----------------------------- wrapper ---------------------------------------------

def _vmem_estimate(plan, l_in, c_in, params):
    """Rough per-grid-step VMEM footprint (bytes) to size vmem_limit_bytes."""
    param_bytes = sum(int(p.size) * p.dtype.itemsize for p in params)
    work = 0
    n = l_in
    for kind, cin, cout in plan:
        layer = n * (cin * 28 + cout * 16)
        if kind == "up":
            layer += 2 * n * cout * 8
            n *= 2
        work = max(work, layer)
    io = 2 * 4 * (l_in * c_in + n * plan[-1][2])      # double-buffered in/out blocks
    return work + io + 2 * param_bytes                # params constant-indexed but 2-buffered


@functools.partial(jax.jit, static_argnums=(2,))
def decoder_forward(x_ncl, params, plan):
    """x_ncl: (B, C_in, L_in) float32 -> (B, C_out, L_in * 2**num_upsamples)."""
    B, c_in, l_in = x_ncl.shape
    n_up = sum(1 for k, _, _ in plan if k == "up")
    s_f = 2 ** n_up
    l_out = l_in * s_f
    c_out = plan[-1][2]

    x_blc = jnp.transpose(x_ncl, (0, 2, 1))           # (B, L, C): channels on lanes

    in_specs = [pl.BlockSpec((1, l_in, c_in), lambda b: (b, 0, 0))]
    for p in params:
        in_specs.append(pl.BlockSpec(p.shape, lambda b: (0, 0)))

    vmem_limit = int(min(max(4 * _vmem_estimate(plan, l_in, c_in, params), 16 << 20), 64 << 20))

    out = pl.pallas_call(
        _make_decoder_kernel(plan, l_in),
        out_shape=jax.ShapeDtypeStruct((B, c_out, l_out), jnp.float32),
        grid=(B,),
        in_specs=in_specs,
        out_specs=pl.BlockSpec((1, c_out, l_out), lambda b: (b, 0, 0)),
        compiler_params=pltpu.CompilerParams(
            dimension_semantics=("parallel",),
            vmem_limit_bytes=vmem_limit),
    )(x_blc, *params)

    # Undo the stream-blocked column order (tiny XLA permute on the small output tensor only).
    out = out.reshape(B, c_out, s_f, l_in).transpose(0, 1, 3, 2).reshape(B, c_out, l_out)
    return out


# ----------------------------- parameters (deterministic synthetic) ----------------

def init_params(key, in_channels, out_channels, hidden_dim, upsampling_factor):
    """Synthetic params.

    Returns (plan, packed, raw):
      packed — kernel layout: per res layer [w_taps (3*Cin,Cout) bf16, aff (3|4,Cout) f32,
               (wr (Cin,Cout) bf16)]; per up layer [w_even, w_odd (2*Cin,Cout) bf16, bias f32].
      raw    — plain f32 per-layer tensors for the pure-JAX reference."""
    plan = build_layer_plan(in_channels, out_channels, hidden_dim, upsampling_factor)
    packed, raw = [], []
    for kind, cin, cout in plan:
        key, k1, k2, k3, k4, k5, k6 = jax.random.split(key, 7)
        s3 = (3.0 * cin) ** -0.5
        w3 = jax.random.uniform(k1, (3, cin, cout), jnp.float32, -s3, s3)  # tap k ~ torch W[:, :, k].T
        b3 = jax.random.uniform(k2, (1, cout), jnp.float32, -s3, s3)
        if kind == "res":
            gamma = 1.0 + 0.05 * jax.random.normal(k3, (1, cout), jnp.float32)
            beta = 0.05 * jax.random.normal(k4, (1, cout), jnp.float32)
            if cin != cout:
                s1 = float(cin) ** -0.5
                wr = jax.random.uniform(k5, (cin, cout), jnp.float32, -s1, s1)
                br = jax.random.uniform(k6, (1, cout), jnp.float32, -s1, s1)
            else:
                wr, br = None, None
            raw.append(("res", w3, b3, gamma, beta, wr, br))
            packed.append(jnp.concatenate([w3[0], w3[1], w3[2]], axis=0).astype(jnp.bfloat16))
            affs = [b3, gamma, beta] + ([br] if br is not None else [])
            packed.append(jnp.concatenate(affs, axis=0))
            if wr is not None:
                packed.append(wr.astype(jnp.bfloat16))
        else:
            raw.append(("up", w3, b3))
            packed.append(jnp.concatenate([w3[0], w3[1] + w3[2]], axis=0).astype(jnp.bfloat16))
            packed.append(jnp.concatenate([w3[0] + w3[1], w3[2]], axis=0).astype(jnp.bfloat16))
            packed.append(b3)
    return plan, packed, raw


# ----------------------------- plain-JAX reference ---------------------------------

def _reference_forward(x_ncl, raw):
    h = jnp.transpose(x_ncl, (0, 2, 1)).astype(jnp.float32)   # (B, L, C)

    def conv3(x, w3, b):
        xp = jnp.pad(x, ((0, 0), (1, 1), (0, 0)))
        return xp[:, :-2] @ w3[0] + xp[:, 1:-1] @ w3[1] + xp[:, 2:] @ w3[2] + b

    for layer in raw:
        if layer[0] == "res":
            _, w3, b, gamma, beta, wr, br = layer
            y = conv3(h, w3, b)
            mu = jnp.mean(y, axis=(1, 2), keepdims=True)
            var = jnp.mean(jnp.square(y - mu), axis=(1, 2), keepdims=True)
            y = (y - mu) * lax.rsqrt(var + GN_EPS) * gamma + beta
            res = h @ wr + br if wr is not None else h
            h = jnp.maximum(y + res, 0.0)
        else:
            _, w3, b = layer
            h = conv3(jnp.repeat(h, 2, axis=1), w3, b)
    return jnp.transpose(h, (0, 2, 1))


# ----------------------------- self-test --------------------------------------------

if __name__ == "__main__":
    BATCH = 2
    IN_CH = 4
    OUT_CH = 2
    HIDDEN = 32
    UP_FACTOR = 2          # two nearest-x2 upsamples -> length x4
    L_IN = 32              # multiple of 8 -> aligned stream blocks; L_OUT = 128 (lane-dense output)

    key = jax.random.PRNGKey(0)
    k_param, k_x = jax.random.split(key)
    plan, params, raw = init_params(k_param, IN_CH, OUT_CH, HIDDEN, UP_FACTOR)
    x = jax.random.normal(k_x, (BATCH, IN_CH, L_IN), jnp.float32)

    out = jax.block_until_ready(decoder_forward(x, params, plan))

    ref = _reference_forward(x, raw)
    L_OUT = L_IN * (2 ** UP_FACTOR)
    assert out.shape == (BATCH, OUT_CH, L_OUT), out.shape
    max_err = float(jnp.max(jnp.abs(out - ref)))
    # tolerance loosened slightly for the bf16 MXU path (stats/residual/ReLU stay f32)
    assert jnp.allclose(out, ref, atol=5e-2, rtol=5e-2), f"max abs err {max_err}"
    print("KERNEL_OK")
</pallas_src>

<mosaic_0001>
module attributes {stable_mosaic.version = 11 : i64} {
  func.func @kernel(%arg0: i32, %arg1: memref<1x32x4xf32, #tpu.memory_space<vmem>>, %arg2: memref<12x32xbf16, #tpu.memory_space<vmem>>, %arg3: memref<4x32xf32, #tpu.memory_space<vmem>>, %arg4: memref<4x32xbf16, #tpu.memory_space<vmem>>, %arg5: memref<96x32xbf16, #tpu.memory_space<vmem>>, %arg6: memref<3x32xf32, #tpu.memory_space<vmem>>, %arg7: memref<64x32xbf16, #tpu.memory_space<vmem>>, %arg8: memref<64x32xbf16, #tpu.memory_space<vmem>>, %arg9: memref<1x32xf32, #tpu.memory_space<vmem>>, %arg10: memref<96x32xbf16, #tpu.memory_space<vmem>>, %arg11: memref<3x32xf32, #tpu.memory_space<vmem>>, %arg12: memref<64x2xbf16, #tpu.memory_space<vmem>>, %arg13: memref<64x2xbf16, #tpu.memory_space<vmem>>, %arg14: memref<1x2xf32, #tpu.memory_space<vmem>>, %arg15: memref<1x2x128xf32, #tpu.memory_space<vmem>>) attributes {dimension_semantics = [#tpu.dimension_semantics<parallel>], iteration_bounds = array<i64: 2>, scalar_prefetch = 0 : i64, scratch_operands = 0 : i64, tpu.core_type = #tpu.core_type<tc>, window_params = [{transform_indices = @transform_0, window_bounds = array<i64: 1, 32, 4>}, {pipeline_mode = #tpu.pipeline_mode<synchronous>, transform_indices = @transform_1, window_bounds = array<i64: 12, 32>}, {pipeline_mode = #tpu.pipeline_mode<synchronous>, transform_indices = @transform_2, window_bounds = array<i64: 4, 32>}, {pipeline_mode = #tpu.pipeline_mode<synchronous>, transform_indices = @transform_3, window_bounds = array<i64: 4, 32>}, {pipeline_mode = #tpu.pipeline_mode<synchronous>, transform_indices = @transform_4, window_bounds = array<i64: 96, 32>}, {pipeline_mode = #tpu.pipeline_mode<synchronous>, transform_indices = @transform_5, window_bounds = array<i64: 3, 32>}, {pipeline_mode = #tpu.pipeline_mode<synchronous>, transform_indices = @transform_6, window_bounds = array<i64: 64, 32>}, {pipeline_mode = #tpu.pipeline_mode<synchronous>, transform_indices = @transform_7, window_bounds = array<i64: 64, 32>}, {pipeline_mode = #tpu.pipeline_mode<synchronous>, transform_indices = @transform_8, window_bounds = array<i64: 1, 32>}, {pipeline_mode = #tpu.pipeline_mode<synchronous>, transform_indices = @transform_9, window_bounds = array<i64: 96, 32>}, {pipeline_mode = #tpu.pipeline_mode<synchronous>, transform_indices = @transform_10, window_bounds = array<i64: 3, 32>}, {pipeline_mode = #tpu.pipeline_mode<synchronous>, transform_indices = @transform_11, window_bounds = array<i64: 64, 2>}, {pipeline_mode = #tpu.pipeline_mode<synchronous>, transform_indices = @transform_12, window_bounds = array<i64: 64, 2>}, {pipeline_mode = #tpu.pipeline_mode<synchronous>, transform_indices = @transform_13, window_bounds = array<i64: 1, 2>}, {transform_indices = @transform_14, window_bounds = array<i64: 1, 2, 128>}]} {
    %c0 = arith.constant 0 : index
    %c0_0 = arith.constant 0 : index
    %c0_1 = arith.constant 0 : index
    %0 = vector.load %arg1[%c0, %c0_0, %c0_1] : memref<1x32x4xf32, #tpu.memory_space<vmem>>, vector<1x32x4xf32>
    %1 = vector.shape_cast %0 : vector<1x32x4xf32> to vector<32x4xf32>
    %2 = tpu.iota {dimensions = array<i32: 0>} : vector<32x4xi32>
    %c0_i32 = arith.constant 0 : i32
    %3 = vector.broadcast %c0_i32 : i32 to vector<32x4xi32>
    %4 = arith.cmpi eq, %2, %3 : vector<32x4xi32>
    %cst = arith.constant 0.000000e+00 : f32
    %5 = vector.broadcast %cst : f32 to vector<32x4xf32>
    %c1_i32 = arith.constant 1 : i32
    %6 = tpu.dynamic_rotate %1 by %c1_i32 dim 0 : vector<32x4xf32>, i32 -> vector<32x4xf32>
    %7 = arith.select %4, %5, %6 : vector<32x4xi1>, vector<32x4xf32>
    %8 = tpu.iota {dimensions = array<i32: 0>} : vector<32x4xi32>
    %c31_i32 = arith.constant 31 : i32
    %9 = vector.broadcast %c31_i32 : i32 to vector<32x4xi32>
    %10 = arith.cmpi eq, %8, %9 : vector<32x4xi32>
    %cst_2 = arith.constant 0.000000e+00 : f32
    %11 = vector.broadcast %cst_2 : f32 to vector<32x4xf32>
    %c31_i32_3 = arith.constant 31 : i32
    %12 = tpu.dynamic_rotate %1 by %c31_i32_3 dim 0 : vector<32x4xf32>, i32 -> vector<32x4xf32>
    %13 = arith.select %10, %11, %12 : vector<32x4xi1>, vector<32x4xf32>
    %c0_4 = arith.constant 0 : index
    %c0_5 = arith.constant 0 : index
    %14 = vector.load %arg2[%c0_4, %c0_5] : memref<12x32xbf16, #tpu.memory_space<vmem>>, vector<12x32xbf16>
    %c0_6 = arith.constant 0 : index
    %c0_7 = arith.constant 0 : index
    %15 = vector.load %arg3[%c0_6, %c0_7] : memref<4x32xf32, #tpu.memory_space<vmem>>, vector<4x32xf32>
    %16 = tpu.concatenate %7, %1, %13 in 1 : vector<32x4xf32>, vector<32x4xf32>, vector<32x4xf32> -> vector<32x12xf32>
    %17 = arith.truncf %16 : vector<32x12xf32> to vector<32x12xbf16>
    %cst_8 = arith.constant dense<0.000000e+00> : vector<32x32xf32>
    %18 = tpu.matmul %17, %14, %cst_8 {dimension_numbers = #tpu.dot_dimension_numbers<[1], [0], [0], [1], [0, 0, 1, 1], [], []>} : vector<32x12xbf16>, vector<12x32xbf16>, vector<32x32xf32> -> vector<32x32xf32>
    %19 = vector.extract_strided_slice %15 {offsets = [0, 0], sizes = [1, 32], strides = [1, 1]} : vector<4x32xf32> to vector<1x32xf32>
    %20 = vector.broadcast %19 : vector<1x32xf32> to vector<32x32xf32>
    %21 = arith.addf %18, %20 : vector<32x32xf32>
    %22 = vector.extract_strided_slice %15 {offsets = [1, 0], sizes = [1, 32], strides = [1, 1]} : vector<4x32xf32> to vector<1x32xf32>
    %23 = vector.extract_strided_slice %15 {offsets = [2, 0], sizes = [1, 32], strides = [1, 1]} : vector<4x32xf32> to vector<1x32xf32>
    %cst_9 = arith.constant dense<0.000000e+00> : vector<32xf32>
    %24 = vector.multi_reduction <add>, %21, %cst_9 [0] : vector<32x32xf32> to vector<32xf32>
    %25 = vector.shape_cast %24 : vector<32xf32> to vector<1x32xf32>
    %26 = arith.mulf %21, %21 : vector<32x32xf32>
    %cst_10 = arith.constant dense<0.000000e+00> : vector<32xf32>
    %27 = vector.multi_reduction <add>, %26, %cst_10 [0] : vector<32x32xf32> to vector<32xf32>
    %28 = vector.shape_cast %27 : vector<32xf32> to vector<1x32xf32>
    %cst_11 = arith.constant dense<0.000000e+00> : vector<1xf32>
    %29 = vector.multi_reduction <add>, %25, %cst_11 [1] : vector<1x32xf32> to vector<1xf32>
    %30 = vector.shape_cast %29 : vector<1xf32> to vector<1x1xf32>
    %cst_12 = arith.constant 1.024000e+03 : f32
    %31 = vector.broadcast %cst_12 : f32 to vector<1x1xf32>
    %32 = arith.divf %30, %31 : vector<1x1xf32>
    %cst_13 = arith.constant dense<0.000000e+00> : vector<1xf32>
    %33 = vector.multi_reduction <add>, %28, %cst_13 [1] : vector<1x32xf32> to vector<1xf32>
    %34 = vector.shape_cast %33 : vector<1xf32> to vector<1x1xf32>
    %cst_14 = arith.constant 1.024000e+03 : f32
    %35 = vector.broadcast %cst_14 : f32 to vector<1x1xf32>
    %36 = arith.divf %34, %35 : vector<1x1xf32>
    %37 = arith.mulf %32, %32 : vector<1x1xf32>
    %38 = arith.subf %36, %37 : vector<1x1xf32>
    %cst_15 = arith.constant 9.99999974E-6 : f32
    %39 = vector.broadcast %cst_15 : f32 to vector<1x1xf32>
    %40 = arith.addf %38, %39 : vector<1x1xf32>
    %41 = math.rsqrt %40 : vector<1x1xf32>
    %42 = vector.broadcast %41 : vector<1x1xf32> to vector<1x32xf32>
    %43 = arith.mulf %42, %22 : vector<1x32xf32>
    %44 = vector.broadcast %43 : vector<1x32xf32> to vector<32x32xf32>
    %45 = arith.mulf %21, %44 : vector<32x32xf32>
    %46 = vector.broadcast %32 : vector<1x1xf32> to vector<1x32xf32>
    %47 = arith.mulf %46, %43 : vector<1x32xf32>
    %48 = arith.subf %23, %47 : vector<1x32xf32>
    %49 = vector.broadcast %48 : vector<1x32xf32> to vector<32x32xf32>
    %50 = arith.addf %45, %49 : vector<32x32xf32>
    %c0_16 = arith.constant 0 : index
    %c0_17 = arith.constant 0 : index
    %51 = vector.load %arg4[%c0_16, %c0_17] : memref<4x32xbf16, #tpu.memory_space<vmem>>, vector<4x32xbf16>
    %52 = arith.truncf %1 : vector<32x4xf32> to vector<32x4xbf16>
    %cst_18 = arith.constant dense<0.000000e+00> : vector<32x32xf32>
    %53 = tpu.matmul %52, %51, %cst_18 {dimension_numbers = #tpu.dot_dimension_numbers<[1], [0], [0], [1], [0, 0, 1, 1], [], []>} : vector<32x4xbf16>, vector<4x32xbf16>, vector<32x32xf32> -> vector<32x32xf32>
    %54 = vector.extract_strided_slice %15 {offsets = [3, 0], sizes = [1, 32], strides = [1, 1]} : vector<4x32xf32> to vector<1x32xf32>
    %55 = vector.broadcast %54 : vector<1x32xf32> to vector<32x32xf32>
    %56 = arith.addf %53, %55 : vector<32x32xf32>
    %57 = arith.addf %50, %56 : vector<32x32xf32>
    %cst_19 = arith.constant 0.000000e+00 : f32
    %58 = vector.broadcast %cst_19 : f32 to vector<32x32xf32>
    %59 = arith.maximumf %57, %58 : vector<32x32xf32>
    %60 = tpu.iota {dimensions = array<i32: 0>} : vector<32x32xi32>
    %c0_i32_20 = arith.constant 0 : i32
    %61 = vector.broadcast %c0_i32_20 : i32 to vector<32x32xi32>
    %62 = arith.cmpi eq, %60, %61 : vector<32x32xi32>
    %cst_21 = arith.constant 0.000000e+00 : f32
    %63 = vector.broadcast %cst_21 : f32 to vector<32x32xf32>
    %c1_i32_22 = arith.constant 1 : i32
    %64 = tpu.dynamic_rotate %59 by %c1_i32_22 dim 0 : vector<32x32xf32>, i32 -> vector<32x32xf32>
    %65 = arith.select %62, %63, %64 : vector<32x32xi1>, vector<32x32xf32>
    %66 = tpu.iota {dimensions = array<i32: 0>} : vector<32x32xi32>
    %c31_i32_23 = arith.constant 31 : i32
    %67 = vector.broadcast %c31_i32_23 : i32 to vector<32x32xi32>
    %68 = arith.cmpi eq, %66, %67 : vector<32x32xi32>
    %cst_24 = arith.constant 0.000000e+00 : f32
    %69 = vector.broadcast %cst_24 : f32 to vector<32x32xf32>
    %c31_i32_25 = arith.constant 31 : i32
    %70 = tpu.dynamic_rotate %59 by %c31_i32_25 dim 0 : vector<32x32xf32>, i32 -> vector<32x32xf32>
    %71 = arith.select %68, %69, %70 : vector<32x32xi1>, vector<32x32xf32>
    %c0_26 = arith.constant 0 : index
    %c0_27 = arith.constant 0 : index
    %72 = vector.load %arg5[%c0_26, %c0_27] : memref<96x32xbf16, #tpu.memory_space<vmem>>, vector<96x32xbf16>
    %c0_28 = arith.constant 0 : index
    %c0_29 = arith.constant 0 : index
    %73 = vector.load %arg6[%c0_28, %c0_29] : memref<3x32xf32, #tpu.memory_space<vmem>>, vector<3x32xf32>
    %74 = tpu.concatenate %65, %59, %71 in 1 : vector<32x32xf32>, vector<32x32xf32>, vector<32x32xf32> -> vector<32x96xf32>
    %75 = arith.truncf %74 : vector<32x96xf32> to vector<32x96xbf16>
    %cst_30 = arith.constant dense<0.000000e+00> : vector<32x32xf32>
    %76 = tpu.matmul %75, %72, %cst_30 {dimension_numbers = #tpu.dot_dimension_numbers<[1], [0], [0], [1], [0, 0, 1, 1], [], []>} : vector<32x96xbf16>, vector<96x32xbf16>, vector<32x32xf32> -> vector<32x32xf32>
    %77 = vector.extract_strided_slice %73 {offsets = [0, 0], sizes = [1, 32], strides = [1, 1]} : vector<3x32xf32> to vector<1x32xf32>
    %78 = vector.broadcast %77 : vector<1x32xf32> to vector<32x32xf32>
    %79 = arith.addf %76, %78 : vector<32x32xf32>
    %80 = vector.extract_strided_slice %73 {offsets = [1, 0], sizes = [1, 32], strides = [1, 1]} : vector<3x32xf32> to vector<1x32xf32>
    %81 = vector.extract_strided_slice %73 {offsets = [2, 0], sizes = [1, 32], strides = [1, 1]} : vector<3x32xf32> to vector<1x32xf32>
    %cst_31 = arith.constant dense<0.000000e+00> : vector<32xf32>
    %82 = vector.multi_reduction <add>, %79, %cst_31 [0] : vector<32x32xf32> to vector<32xf32>
    %83 = vector.shape_cast %82 : vector<32xf32> to vector<1x32xf32>
    %84 = arith.mulf %79, %79 : vector<32x32xf32>
    %cst_32 = arith.constant dense<0.000000e+00> : vector<32xf32>
    %85 = vector.multi_reduction <add>, %84, %cst_32 [0] : vector<32x32xf32> to vector<32xf32>
    %86 = vector.shape_cast %85 : vector<32xf32> to vector<1x32xf32>
    %cst_33 = arith.constant dense<0.000000e+00> : vector<1xf32>
    %87 = vector.multi_reduction <add>, %83, %cst_33 [1] : vector<1x32xf32> to vector<1xf32>
    %88 = vector.shape_cast %87 : vector<1xf32> to vector<1x1xf32>
    %cst_34 = arith.constant 1.024000e+03 : f32
    %89 = vector.broadcast %cst_34 : f32 to vector<1x1xf32>
    %90 = arith.divf %88, %89 : vector<1x1xf32>
    %cst_35 = arith.constant dense<0.000000e+00> : vector<1xf32>
    %91 = vector.multi_reduction <add>, %86, %cst_35 [1] : vector<1x32xf32> to vector<1xf32>
    %92 = vector.shape_cast %91 : vector<1xf32> to vector<1x1xf32>
    %cst_36 = arith.constant 1.024000e+03 : f32
    %93 = vector.broadcast %cst_36 : f32 to vector<1x1xf32>
    %94 = arith.divf %92, %93 : vector<1x1xf32>
    %95 = arith.mulf %90, %90 : vector<1x1xf32>
    %96 = arith.subf %94, %95 : vector<1x1xf32>
    %cst_37 = arith.constant 9.99999974E-6 : f32
    %97 = vector.broadcast %cst_37 : f32 to vector<1x1xf32>
    %98 = arith.addf %96, %97 : vector<1x1xf32>
    %99 = math.rsqrt %98 : vector<1x1xf32>
    %100 = vector.broadcast %99 : vector<1x1xf32> to vector<1x32xf32>
    %101 = arith.mulf %100, %80 : vector<1x32xf32>
    %102 = vector.broadcast %101 : vector<1x32xf32> to vector<32x32xf32>
    %103 = arith.mulf %79, %102 : vector<32x32xf32>
    %104 = vector.broadcast %90 : vector<1x1xf32> to vector<1x32xf32>
    %105 = arith.mulf %104, %101 : vector<1x32xf32>
    %106 = arith.subf %81, %105 : vector<1x32xf32>
    %107 = vector.broadcast %106 : vector<1x32xf32> to vector<32x32xf32>
    %108 = arith.addf %103, %107 : vector<32x32xf32>
    %109 = arith.addf %108, %59 : vector<32x32xf32>
    %cst_38 = arith.constant 0.000000e+00 : f32
    %110 = vector.broadcast %cst_38 : f32 to vector<32x32xf32>
    %111 = arith.maximumf %109, %110 : vector<32x32xf32>
    %112 = tpu.iota {dimensions = array<i32: 0>} : vector<32x32xi32>
    %c0_i32_39 = arith.constant 0 : i32
    %113 = vector.broadcast %c0_i32_39 : i32 to vector<32x32xi32>
    %114 = arith.cmpi eq, %112, %113 : vector<32x32xi32>
    %cst_40 = arith.constant 0.000000e+00 : f32
    %115 = vector.broadcast %cst_40 : f32 to vector<32x32xf32>
    %c1_i32_41 = arith.constant 1 : i32
    %116 = tpu.dynamic_rotate %111 by %c1_i32_41 dim 0 : vector<32x32xf32>, i32 -> vector<32x32xf32>
    %117 = arith.select %114, %115, %116 : vector<32x32xi1>, vector<32x32xf32>
    %118 = tpu.iota {dimensions = array<i32: 0>} : vector<32x32xi32>
    %c31_i32_42 = arith.constant 31 : i32
    %119 = vector.broadcast %c31_i32_42 : i32 to vector<32x32xi32>
    %120 = arith.cmpi eq, %118, %119 : vector<32x32xi32>
    %cst_43 = arith.constant 0.000000e+00 : f32
    %121 = vector.broadcast %cst_43 : f32 to vector<32x32xf32>
    %c31_i32_44 = arith.constant 31 : i32
    %122 = tpu.dynamic_rotate %111 by %c31_i32_44 dim 0 : vector<32x32xf32>, i32 -> vector<32x32xf32>
    %123 = arith.select %120, %121, %122 : vector<32x32xi1>, vector<32x32xf32>
    %c0_45 = arith.constant 0 : index
    %c0_46 = arith.constant 0 : index
    %124 = vector.load %arg7[%c0_45, %c0_46] : memref<64x32xbf16, #tpu.memory_space<vmem>>, vector<64x32xbf16>
    %c0_47 = arith.constant 0 : index
    %c0_48 = arith.constant 0 : index
    %125 = vector.load %arg8[%c0_47, %c0_48] : memref<64x32xbf16, #tpu.memory_space<vmem>>, vector<64x32xbf16>
    %c0_49 = arith.constant 0 : index
    %c0_50 = arith.constant 0 : index
    %126 = vector.load %arg9[%c0_49, %c0_50] : memref<1x32xf32, #tpu.memory_space<vmem>>, vector<1x32xf32>
    %127 = tpu.concatenate %117, %111 in 1 : vector<32x32xf32>, vector<32x32xf32> -> vector<32x64xf32>
    %128 = arith.truncf %127 : vector<32x64xf32> to vector<32x64xbf16>
    %cst_51 = arith.constant dense<0.000000e+00> : vector<32x32xf32>
    %129 = tpu.matmul %128, %124, %cst_51 {dimension_numbers = #tpu.dot_dimension_numbers<[1], [0], [0], [1], [0, 0, 1, 1], [], []>} : vector<32x64xbf16>, vector<64x32xbf16>, vector<32x32xf32> -> vector<32x32xf32>
    %130 = vector.broadcast %126 : vector<1x32xf32> to vector<32x32xf32>
    %131 = arith.addf %129, %130 : vector<32x32xf32>
    %132 = tpu.concatenate %111, %123 in 1 : vector<32x32xf32>, vector<32x32xf32> -> vector<32x64xf32>
    %133 = arith.truncf %132 : vector<32x64xf32> to vector<32x64xbf16>
    %cst_52 = arith.constant dense<0.000000e+00> : vector<32x32xf32>
    %134 = tpu.matmul %133, %125, %cst_52 {dimension_numbers = #tpu.dot_dimension_numbers<[1], [0], [0], [1], [0, 0, 1, 1], [], []>} : vector<32x64xbf16>, vector<64x32xbf16>, vector<32x32xf32> -> vector<32x32xf32>
    %135 = vector.broadcast %126 : vector<1x32xf32> to vector<32x32xf32>
    %136 = arith.addf %134, %135 : vector<32x32xf32>
    %137 = tpu.concatenate %131, %136 in 0 : vector<32x32xf32>, vector<32x32xf32> -> vector<64x32xf32>
    %138 = vector.extract_strided_slice %137 {offsets = [32, 0], sizes = [32, 32], strides = [1, 1]} : vector<64x32xf32> to vector<32x32xf32>
    %139 = tpu.iota {dimensions = array<i32: 0>} : vector<32x32xi32>
    %c0_i32_53 = arith.constant 0 : i32
    %140 = vector.broadcast %c0_i32_53 : i32 to vector<32x32xi32>
    %141 = arith.cmpi eq, %139, %140 : vector<32x32xi32>
    %cst_54 = arith.constant 0.000000e+00 : f32
    %142 = vector.broadcast %cst_54 : f32 to vector<32x32xf32>
    %c1_i32_55 = arith.constant 1 : i32
    %143 = tpu.dynamic_rotate %138 by %c1_i32_55 dim 0 : vector<32x32xf32>, i32 -> vector<32x32xf32>
    %144 = arith.select %141, %142, %143 : vector<32x32xi1>, vector<32x32xf32>
    %145 = vector.extract_strided_slice %137 {offsets = [0, 0], sizes = [32, 32], strides = [1, 1]} : vector<64x32xf32> to vector<32x32xf32>
    %146 = tpu.iota {dimensions = array<i32: 0>} : vector<32x32xi32>
    %c31_i32_56 = arith.constant 31 : i32
    %147 = vector.broadcast %c31_i32_56 : i32 to vector<32x32xi32>
    %148 = arith.cmpi eq, %146, %147 : vector<32x32xi32>
    %cst_57 = arith.constant 0.000000e+00 : f32
    %149 = vector.broadcast %cst_57 : f32 to vector<32x32xf32>
    %c31_i32_58 = arith.constant 31 : i32
    %150 = tpu.dynamic_rotate %145 by %c31_i32_58 dim 0 : vector<32x32xf32>, i32 -> vector<32x32xf32>
    %151 = arith.select %148, %149, %150 : vector<32x32xi1>, vector<32x32xf32>
    %152 = vector.extract_strided_slice %137 {offsets = [0, 0], sizes = [32, 32], strides = [1, 1]} : vector<64x32xf32> to vector<32x32xf32>
    %153 = tpu.concatenate %144, %152 in 0 : vector<32x32xf32>, vector<32x32xf32> -> vector<64x32xf32>
    %154 = vector.extract_strided_slice %137 {offsets = [32, 0], sizes = [32, 32], strides = [1, 1]} : vector<64x32xf32> to vector<32x32xf32>
    %155 = tpu.concatenate %154, %151 in 0 : vector<32x32xf32>, vector<32x32xf32> -> vector<64x32xf32>
    %c0_59 = arith.constant 0 : index
    %c0_60 = arith.constant 0 : index
    %156 = vector.load %arg10[%c0_59, %c0_60] : memref<96x32xbf16, #tpu.memory_space<vmem>>, vector<96x32xbf16>
    %c0_61 = arith.constant 0 : index
    %c0_62 = arith.constant 0 : index
    %157 = vector.load %arg11[%c0_61, %c0_62] : memref<3x32xf32, #tpu.memory_space<vmem>>, vector<3x32xf32>
    %158 = tpu.concatenate %153, %137, %155 in 1 : vector<64x32xf32>, vector<64x32xf32>, vector<64x32xf32> -> vector<64x96xf32>
    %159 = arith.truncf %158 : vector<64x96xf32> to vector<64x96xbf16>
    %cst_63 = arith.constant dense<0.000000e+00> : vector<64x32xf32>
    %160 = tpu.matmul %159, %156, %cst_63 {dimension_numbers = #tpu.dot_dimension_numbers<[1], [0], [0], [1], [0, 0, 1, 1], [], []>} : vector<64x96xbf16>, vector<96x32xbf16>, vector<64x32xf32> -> vector<64x32xf32>
    %161 = vector.extract_strided_slice %157 {offsets = [0, 0], sizes = [1, 32], strides = [1, 1]} : vector<3x32xf32> to vector<1x32xf32>
    %162 = vector.broadcast %161 : vector<1x32xf32> to vector<64x32xf32>
    %163 = arith.addf %160, %162 : vector<64x32xf32>
    %164 = vector.extract_strided_slice %157 {offsets = [1, 0], sizes = [1, 32], strides = [1, 1]} : vector<3x32xf32> to vector<1x32xf32>
    %165 = vector.extract_strided_slice %157 {offsets = [2, 0], sizes = [1, 32], strides = [1, 1]} : vector<3x32xf32> to vector<1x32xf32>
    %cst_64 = arith.constant dense<0.000000e+00> : vector<32xf32>
    %166 = vector.multi_reduction <add>, %163, %cst_64 [0] : vector<64x32xf32> to vector<32xf32>
    %167 = vector.shape_cast %166 : vector<32xf32> to vector<1x32xf32>
    %168 = arith.mulf %163, %163 : vector<64x32xf32>
    %cst_65 = arith.constant dense<0.000000e+00> : vector<32xf32>
    %169 = vector.multi_reduction <add>, %168, %cst_65 [0] : vector<64x32xf32> to vector<32xf32>
    %170 = vector.shape_cast %169 : vector<32xf32> to vector<1x32xf32>
    %cst_66 = arith.constant dense<0.000000e+00> : vector<1xf32>
    %171 = vector.multi_reduction <add>, %167, %cst_66 [1] : vector<1x32xf32> to vector<1xf32>
    %172 = vector.shape_cast %171 : vector<1xf32> to vector<1x1xf32>
    %cst_67 = arith.constant 2.048000e+03 : f32
    %173 = vector.broadcast %cst_67 : f32 to vector<1x1xf32>
    %174 = arith.divf %172, %173 : vector<1x1xf32>
    %cst_68 = arith.constant dense<0.000000e+00> : vector<1xf32>
    %175 = vector.multi_reduction <add>, %170, %cst_68 [1] : vector<1x32xf32> to vector<1xf32>
    %176 = vector.shape_cast %175 : vector<1xf32> to vector<1x1xf32>
    %cst_69 = arith.constant 2.048000e+03 : f32
    %177 = vector.broadcast %cst_69 : f32 to vector<1x1xf32>
    %178 = arith.divf %176, %177 : vector<1x1xf32>
    %179 = arith.mulf %174, %174 : vector<1x1xf32>
    %180 = arith.subf %178, %179 : vector<1x1xf32>
    %cst_70 = arith.constant 9.99999974E-6 : f32
    %181 = vector.broadcast %cst_70 : f32 to vector<1x1xf32>
    %182 = arith.addf %180, %181 : vector<1x1xf32>
    %183 = math.rsqrt %182 : vector<1x1xf32>
    %184 = vector.broadcast %183 : vector<1x1xf32> to vector<1x32xf32>
    %185 = arith.mulf %184, %164 : vector<1x32xf32>
    %186 = vector.broadcast %185 : vector<1x32xf32> to vector<64x32xf32>
    %187 = arith.mulf %163, %186 : vector<64x32xf32>
    %188 = vector.broadcast %174 : vector<1x1xf32> to vector<1x32xf32>
    %189 = arith.mulf %188, %185 : vector<1x32xf32>
    %190 = arith.subf %165, %189 : vector<1x32xf32>
    %191 = vector.broadcast %190 : vector<1x32xf32> to vector<64x32xf32>
    %192 = arith.addf %187, %191 : vector<64x32xf32>
    %193 = arith.addf %192, %137 : vector<64x32xf32>
    %cst_71 = arith.constant 0.000000e+00 : f32
    %194 = vector.broadcast %cst_71 : f32 to vector<64x32xf32>
    %195 = arith.maximumf %193, %194 : vector<64x32xf32>
    %196 = vector.extract_strided_slice %195 {offsets = [32, 0], sizes = [32, 32], strides = [1, 1]} : vector<64x32xf32> to vector<32x32xf32>
    %197 = tpu.iota {dimensions = array<i32: 0>} : vector<32x32xi32>
    %c0_i32_72 = arith.constant 0 : i32
    %198 = vector.broadcast %c0_i32_72 : i32 to vector<32x32xi32>
    %199 = arith.cmpi eq, %197, %198 : vector<32x32xi32>
    %cst_73 = arith.constant 0.000000e+00 : f32
    %200 = vector.broadcast %cst_73 : f32 to vector<32x32xf32>
    %c1_i32_74 = arith.constant 1 : i32
    %201 = tpu.dynamic_rotate %196 by %c1_i32_74 dim 0 : vector<32x32xf32>, i32 -> vector<32x32xf32>
    %202 = arith.select %199, %200, %201 : vector<32x32xi1>, vector<32x32xf32>
    %203 = vector.extract_strided_slice %195 {offsets = [0, 0], sizes = [32, 32], strides = [1, 1]} : vector<64x32xf32> to vector<32x32xf32>
    %204 = tpu.iota {dimensions = array<i32: 0>} : vector<32x32xi32>
    %c31_i32_75 = arith.constant 31 : i32
    %205 = vector.broadcast %c31_i32_75 : i32 to vector<32x32xi32>
    %206 = arith.cmpi eq, %204, %205 : vector<32x32xi32>
    %cst_76 = arith.constant 0.000000e+00 : f32
    %207 = vector.broadcast %cst_76 : f32 to vector<32x32xf32>
    %c31_i32_77 = arith.constant 31 : i32
    %208 = tpu.dynamic_rotate %203 by %c31_i32_77 dim 0 : vector<32x32xf32>, i32 -> vector<32x32xf32>
    %209 = arith.select %206, %207, %208 : vector<32x32xi1>, vector<32x32xf32>
    %210 = vector.extract_strided_slice %195 {offsets = [0, 0], sizes = [32, 32], strides = [1, 1]} : vector<64x32xf32> to vector<32x32xf32>
    %211 = tpu.concatenate %202, %210 in 0 : vector<32x32xf32>, vector<32x32xf32> -> vector<64x32xf32>
    %212 = vector.extract_strided_slice %195 {offsets = [32, 0], sizes = [32, 32], strides = [1, 1]} : vector<64x32xf32> to vector<32x32xf32>
    %213 = tpu.concatenate %212, %209 in 0 : vector<32x32xf32>, vector<32x32xf32> -> vector<64x32xf32>
    %c0_78 = arith.constant 0 : index
    %c0_79 = arith.constant 0 : index
    %214 = vector.load %arg12[%c0_78, %c0_79] : memref<64x2xbf16, #tpu.memory_space<vmem>>, vector<64x2xbf16>
    %c0_80 = arith.constant 0 : index
    %c0_81 = arith.constant 0 : index
    %215 = vector.load %arg13[%c0_80, %c0_81] : memref<64x2xbf16, #tpu.memory_space<vmem>>, vector<64x2xbf16>
    %c0_82 = arith.constant 0 : index
    %c0_83 = arith.constant 0 : index
    %216 = vector.load %arg14[%c0_82, %c0_83] : memref<1x2xf32, #tpu.memory_space<vmem>>, vector<1x2xf32>
    %217 = tpu.concatenate %211, %195 in 1 : vector<64x32xf32>, vector<64x32xf32> -> vector<64x64xf32>
    %218 = arith.truncf %217 : vector<64x64xf32> to vector<64x64xbf16>
    %cst_84 = arith.constant dense<0.000000e+00> : vector<64x2xf32>
    %219 = tpu.matmul %218, %214, %cst_84 {dimension_numbers = #tpu.dot_dimension_numbers<[1], [0], [0], [1], [0, 0, 1, 1], [], []>} : vector<64x64xbf16>, vector<64x2xbf16>, vector<64x2xf32> -> vector<64x2xf32>
    %220 = vector.broadcast %216 : vector<1x2xf32> to vector<64x2xf32>
    %221 = arith.addf %219, %220 : vector<64x2xf32>
    %222 = tpu.concatenate %195, %213 in 1 : vector<64x32xf32>, vector<64x32xf32> -> vector<64x64xf32>
    %223 = arith.truncf %222 : vector<64x64xf32> to vector<64x64xbf16>
    %cst_85 = arith.constant dense<0.000000e+00> : vector<64x2xf32>
    %224 = tpu.matmul %223, %215, %cst_85 {dimension_numbers = #tpu.dot_dimension_numbers<[1], [0], [0], [1], [0, 0, 1, 1], [], []>} : vector<64x64xbf16>, vector<64x2xbf16>, vector<64x2xf32> -> vector<64x2xf32>
    %225 = vector.broadcast %216 : vector<1x2xf32> to vector<64x2xf32>
    %226 = arith.addf %224, %225 : vector<64x2xf32>
    %227 = vector.extract_strided_slice %221 {offsets = [0, 0], sizes = [32, 2], strides = [1, 1]} : vector<64x2xf32> to vector<32x2xf32>
    %228 = vector.extract_strided_slice %226 {offsets = [0, 0], sizes = [32, 2], strides = [1, 1]} : vector<64x2xf32> to vector<32x2xf32>
    %229 = vector.extract_strided_slice %221 {offsets = [32, 0], sizes = [32, 2], strides = [1, 1]} : vector<64x2xf32> to vector<32x2xf32>
    %230 = vector.extract_strided_slice %226 {offsets = [32, 0], sizes = [32, 2], strides = [1, 1]} : vector<64x2xf32> to vector<32x2xf32>
    %231 = tpu.concatenate %227, %228, %229, %230 in 0 : vector<32x2xf32>, vector<32x2xf32>, vector<32x2xf32>, vector<32x2xf32> -> vector<128x2xf32>
    %232 = tpu.transpose %231, [1, 0] : vector<128x2xf32> -> vector<2x128xf32>
    %c0_86 = arith.constant 0 : index
    %c0_87 = arith.constant 0 : index
    %c0_88 = arith.constant 0 : index
    %233 = vector.load %arg15[%c0_86, %c0_87, %c0_88] : memref<1x2x128xf32, #tpu.memory_space<vmem>>, vector<1x2x128xf32>
    %234 = vector.shape_cast %233 : vector<1x2x128xf32> to vector<2x128xf32>
    %235 = vector.shape_cast %232 : vector<2x128xf32> to vector<1x2x128xf32>
    tpu.vector_store %arg15[%c0_86, %c0_87, %c0_88], %235 {strides = array<i32>} : memref<1x2x128xf32, #tpu.memory_space<vmem>>, vector<1x2x128xf32>,
    return
  }
  func.func @transform_0(%arg0: i32) -> (i32, i32, i32) {
    %c0_i32 = arith.constant 0 : i32
    %c0_i32_0 = arith.constant 0 : i32
    %c0_i32_1 = arith.constant 0 : i32
    return %arg0, %c0_i32, %c0_i32_0 : i32, i32, i32
  }
  func.func @transform_1(%arg0: i32) -> (i32, i32) {
    %c0_i32 = arith.constant 0 : i32
    %c0_i32_0 = arith.constant 0 : i32
    %c0_i32_1 = arith.constant 0 : i32
    return %c0_i32, %c0_i32_0 : i32, i32
  }
  func.func @transform_2(%arg0: i32) -> (i32, i32) {
    %c0_i32 = arith.constant 0 : i32
    %c0_i32_0 = arith.constant 0 : i32
    %c0_i32_1 = arith.constant 0 : i32
    return %c0_i32, %c0_i32_0 : i32, i32
  }
  func.func @transform_3(%arg0: i32) -> (i32, i32) {
    %c0_i32 = arith.constant 0 : i32
    %c0_i32_0 = arith.constant 0 : i32
    %c0_i32_1 = arith.constant 0 : i32
    return %c0_i32, %c0_i32_0 : i32, i32
  }
  func.func @transform_4(%arg0: i32) -> (i32, i32) {
    %c0_i32 = arith.constant 0 : i32
    %c0_i32_0 = arith.constant 0 : i32
    %c0_i32_1 = arith.constant 0 : i32
    return %c0_i32, %c0_i32_0 : i32, i32
  }
  func.func @transform_5(%arg0: i32) -> (i32, i32) {
    %c0_i32 = arith.constant 0 : i32
    %c0_i32_0 = arith.constant 0 : i32
    %c0_i32_1 = arith.constant 0 : i32
    return %c0_i32, %c0_i32_0 : i32, i32
  }
  func.func @transform_6(%arg0: i32) -> (i32, i32) {
    %c0_i32 = arith.constant 0 : i32
    %c0_i32_0 = arith.constant 0 : i32
    %c0_i32_1 = arith.constant 0 : i32
    return %c0_i32, %c0_i32_0 : i32, i32
  }
  func.func @transform_7(%arg0: i32) -> (i32, i32) {
    %c0_i32 = arith.constant 0 : i32
    %c0_i32_0 = arith.constant 0 : i32
    %c0_i32_1 = arith.constant 0 : i32
    return %c0_i32, %c0_i32_0 : i32, i32
  }
  func.func @transform_8(%arg0: i32) -> (i32, i32) {
    %c0_i32 = arith.constant 0 : i32
    %c0_i32_0 = arith.constant 0 : i32
    %c0_i32_1 = arith.constant 0 : i32
    return %c0_i32, %c0_i32_0 : i32, i32
  }
  func.func @transform_9(%arg0: i32) -> (i32, i32) {
    %c0_i32 = arith.constant 0 : i32
    %c0_i32_0 = arith.constant 0 : i32
    %c0_i32_1 = arith.constant 0 : i32
    return %c0_i32, %c0_i32_0 : i32, i32
  }
  func.func @transform_10(%arg0: i32) -> (i32, i32) {
    %c0_i32 = arith.constant 0 : i32
    %c0_i32_0 = arith.constant 0 : i32
    %c0_i32_1 = arith.constant 0 : i32
    return %c0_i32, %c0_i32_0 : i32, i32
  }
  func.func @transform_11(%arg0: i32) -> (i32, i32) {
    %c0_i32 = arith.constant 0 : i32
    %c0_i32_0 = arith.constant 0 : i32
    %c0_i32_1 = arith.constant 0 : i32
    return %c0_i32, %c0_i32_0 : i32, i32
  }
  func.func @transform_12(%arg0: i32) -> (i32, i32) {
    %c0_i32 = arith.constant 0 : i32
    %c0_i32_0 = arith.constant 0 : i32
    %c0_i32_1 = arith.constant 0 : i32
    return %c0_i32, %c0_i32_0 : i32, i32
  }
  func.func @transform_13(%arg0: i32) -> (i32, i32) {
    %c0_i32 = arith.constant 0 : i32
    %c0_i32_0 = arith.constant 0 : i32
    %c0_i32_1 = arith.constant 0 : i32
    return %c0_i32, %c0_i32_0 : i32, i32
  }
  func.func @transform_14(%arg0: i32) -> (i32, i32, i32) {
    %c0_i32 = arith.constant 0 : i32
    %c0_i32_0 = arith.constant 0 : i32
    %c0_i32_1 = arith.constant 0 : i32
    return %arg0, %c0_i32, %c0_i32_0 : i32, i32, i32
  }
}

</mosaic_0001>

<llo_original>
// kernel: decoder_forward.1
$region0: #{decoder_forward.1}
  #allocation0 [shape = 'u32[]', space=smem, size = 0x4, offset = 0x4, fixed_abs, tag = 'smem constant byte address 0x4 - core index']
  #allocation1 [shape = 'u32[144,128]{1,0:T(1,128)}', space=vmem, size = 0x12000, scoped, tag = 'internal scratch']
  %s0 = inlined_call_operand.vmem [shape: f32[2,32,4], index: 0, kind: input, shape index: {}]
  %s1 = inlined_call_operand.vmem [shape: bf16[12,32], index: 1, kind: input, shape index: {}]
  %s2 = inlined_call_operand.vmem [shape: f32[4,32], index: 2, kind: input, shape index: {}]
  %s3 = inlined_call_operand.vmem [shape: bf16[4,32], index: 3, kind: input, shape index: {}]
  %s4 = inlined_call_operand.vmem [shape: bf16[96,32], index: 4, kind: input, shape index: {}]
  %s5 = inlined_call_operand.vmem [shape: f32[3,32], index: 5, kind: input, shape index: {}]
  %s6 = inlined_call_operand.vmem [shape: bf16[64,32], index: 6, kind: input, shape index: {}]
  %s7 = inlined_call_operand.vmem [shape: bf16[64,32], index: 7, kind: input, shape index: {}]
  %s8 = inlined_call_operand.vmem [shape: f32[1,32], index: 8, kind: input, shape index: {}]
  %s9 = inlined_call_operand.vmem [shape: bf16[96,32], index: 9, kind: input, shape index: {}]
  %s10 = inlined_call_operand.vmem [shape: f32[3,32], index: 10, kind: input, shape index: {}]
  %s11 = inlined_call_operand.vmem [shape: bf16[64,2], index: 11, kind: input, shape index: {}]
  %s12 = inlined_call_operand.vmem [shape: bf16[64,2], index: 12, kind: input, shape index: {}]
  %s13 = inlined_call_operand.vmem [shape: f32[1,2], index: 13, kind: input, shape index: {}]
  %s14 = inlined_call_operand.vmem [shape: f32[2,2,128], index: 14, kind: output, shape index: {}]
  %s15 = sld [smem:[#allocation0]]
  $region89: #{decoder_forward.1} parent=0
    _
  %s17 = ssub.s32 1, %s15
  %s18 = scalar_select 0, %s17, %s15
  loop: start=0, step=1, limit=4
  $region2: #{decoder_forward.1} parent=0 // loop_pre_header
    _
  $region3: #{decoder_forward.1} parent=0 // loop_header
    %s20 = sphi 0, %s24
    %p21 = scmp.ge.s32.totalorder %s20, 4
    %s30 = sphi 0, %s32
    %s33 = sphi 0, %s30
    %s34 = sphi 0, %s33
    %s50 = sphi 0, %s34
    %s54 = sphi 0, %s54
    %s56 = sphi 0, %s54
    %s57 = sphi 0, %s56
    %s71 = sphi 0, %s57
    %s75 = sphi 0, %s75
    %s77 = sphi 0, %s75
    %s78 = sphi 0, %s77
    %s92 = sphi 0, %s78
    %s96 = sphi 0, %s96
    %s98 = sphi 0, %s96
    %s99 = sphi 0, %s98
    %s113 = sphi 0, %s99
    %s117 = sphi 0, %s117
    %s119 = sphi 0, %s117
    %s120 = sphi 0, %s119
    %s134 = sphi 0, %s120
    %s138 = sphi 0, %s138
    %s140 = sphi 0, %s138
    %s141 = sphi 0, %s140
    %s155 = sphi 0, %s141
    %s159 = sphi 0, %s159
    %s161 = sphi 0, %s159
    %s162 = sphi 0, %s161
    %s176 = sphi 0, %s162
    %s180 = sphi 0, %s180
    %s182 = sphi 0, %s180
    %s183 = sphi 0, %s182
    %s197 = sphi 0, %s183
    %s201 = sphi 0, %s201
    %s203 = sphi 0, %s201
    %s204 = sphi 0, %s203
    %s218 = sphi 0, %s204
    %s222 = sphi 0, %s222
    %s224 = sphi 0, %s222
    %s225 = sphi 0, %s224
    %s239 = sphi 0, %s225
    %s243 = sphi 0, %s243
    %s245 = sphi 0, %s243
    %s246 = sphi 0, %s245
    %s260 = sphi 0, %s246
    %s264 = sphi 0, %s264
    %s266 = sphi 0, %s264
    %s267 = sphi 0, %s266
    %s281 = sphi 0, %s267
    %s285 = sphi 0, %s285
    %s287 = sphi 0, %s285
    %s288 = sphi 0, %s287
    %s302 = sphi 0, %s288
    %s306 = sphi 0, %s306
    %s308 = sphi 0, %s306
    %s309 = sphi 0, %s308
    %s323 = sphi 0, %s309
    %s329 = sphi 0, %s331
    %s332 = sphi 0, %s329
    %s333 = sphi 0, %s332
    %s349 = sphi 0, %s333
  $region4: #{decoder_forward.1} parent=0 // loop_header_branch
    %23 = sbr.rel (%p21) target = $region8
  $region5: #{decoder_forward.1} parent=0 // loop_body
    %s25 = ssub.s32 %s20, 1
    %s26 = ssub.s32 %s20, 2
    %s27 = sadd.s32 %s20, 1
    %s28 = ssub.s32 %s20, %s27
    %p29 = scmp.eq.s32.totalorder %s28, 0
    %s31 = sadd.s32 %s30, 1
    %s32 = scalar_select %p29, %s30, %s31
    %p35 = pneg %p29
    %p36 = scmp.eq.s32.totalorder %s20, 1
    %p37 = por %p35, %p36
    %p38 = scmp.ne.s32.totalorder %s30, %s33
    %p39 = scmp.eq.s32.totalorder %s20, 0
    %p40 = por %p38, %p39
    %p41 = scmp.ne.s32.totalorder %s30, %s33
    %p42 = scmp.eq.s32.totalorder %s25, 1
    %p43 = por %p41, %p42
    %p44 = scmp.ne.s32.totalorder %s33, %s34
    %p45 = scmp.eq.s32.totalorder %s25, 0
    %p46 = por %p44, %p45
    %p47 = scmp.ne.s32.totalorder %s33, %s34
    %p48 = scmp.eq.s32.totalorder %s26, 1
    %p49 = por %p47, %p48
    %p51 = scmp.ne.s32.totalorder %s34, %s50
    %p52 = scmp.eq.s32.totalorder %s26, 0
    %p53 = por %p51, %p52
    %s55 = sadd.s32 %s54, 1
    %p58 = scmp.eq.s32.totalorder %s20, 1
    %p59 = scmp.ne.s32.totalorder %s54, %s56
    %p60 = scmp.eq.s32.totalorder %s20, 0
    %p61 = por %p59, %p60
    %p62 = scmp.ne.s32.totalorder %s54, %s56
    %p63 = scmp.eq.s32.totalorder %s25, 1
    %p64 = por %p62, %p63
    %p65 = scmp.ne.s32.totalorder %s56, %s57
    %p66 = scmp.eq.s32.totalorder %s25, 0
    %p67 = por %p65, %p66
    %p68 = scmp.ne.s32.totalorder %s56, %s57
    %p69 = scmp.eq.s32.totalorder %s26, 1
    %p70 = por %p68, %p69
    %p72 = scmp.ne.s32.totalorder %s57, %s71
    %p73 = scmp.eq.s32.totalorder %s26, 0
    %p74 = por %p72, %p73
    %s76 = sadd.s32 %s75, 1
    %p79 = scmp.eq.s32.totalorder %s20, 1
    %p80 = scmp.ne.s32.totalorder %s75, %s77
    %p81 = scmp.eq.s32.totalorder %s20, 0
    %p82 = por %p80, %p81
    %p83 = scmp.ne.s32.totalorder %s75, %s77
    %p84 = scmp.eq.s32.totalorder %s25, 1
    %p85 = por %p83, %p84
    %p86 = scmp.ne.s32.totalorder %s77, %s78
    %p87 = scmp.eq.s32.totalorder %s25, 0
    %p88 = por %p86, %p87
    %p89 = scmp.ne.s32.totalorder %s77, %s78
    %p90 = scmp.eq.s32.totalorder %s26, 1
    %p91 = por %p89, %p90
    %p93 = scmp.ne.s32.totalorder %s78, %s92
    %p94 = scmp.eq.s32.totalorder %s26, 0
    %p95 = por %p93, %p94
    %s97 = sadd.s32 %s96, 1
    %p100 = scmp.eq.s32.totalorder %s20, 1
    %p101 = scmp.ne.s32.totalorder %s96, %s98
    %p102 = scmp.eq.s32.totalorder %s20, 0
    %p103 = por %p101, %p102
    %p104 = scmp.ne.s32.totalorder %s96, %s98
    %p105 = scmp.eq.s32.totalorder %s25, 1
    %p106 = por %p104, %p105
    %p107 = scmp.ne.s32.totalorder %s98, %s99
    %p108 = scmp.eq.s32.totalorder %s25, 0
    %p109 = por %p107, %p108
    %p110 = scmp.ne.s32.totalorder %s98, %s99
    %p111 = scmp.eq.s32.totalorder %s26, 1
    %p112 = por %p110, %p111
    %p114 = scmp.ne.s32.totalorder %s99, %s113
    %p115 = scmp.eq.s32.totalorder %s26, 0
    %p116 = por %p114, %p115
    %s118 = sadd.s32 %s117, 1
    %p121 = scmp.eq.s32.totalorder %s20, 1
    %p122 = scmp.ne.s32.totalorder %s117, %s119
    %p123 = scmp.eq.s32.totalorder %s20, 0
    %p124 = por %p122, %p123
    %p125 = scmp.ne.s32.totalorder %s117, %s119
    %p126 = scmp.eq.s32.totalorder %s25, 1
    %p127 = por %p125, %p126
    %p128 = scmp.ne.s32.totalorder %s119, %s120
    %p129 = scmp.eq.s32.totalorder %s25, 0
    %p130 = por %p128, %p129
    %p131 = scmp.ne.s32.totalorder %s119, %s120
    %p132 = scmp.eq.s32.totalorder %s26, 1
    %p133 = por %p131, %p132
    %p135 = scmp.ne.s32.totalorder %s120, %s134
    %p136 = scmp.eq.s32.totalorder %s26, 0
    %p137 = por %p135, %p136
    %s139 = sadd.s32 %s138, 1
    %p142 = scmp.eq.s32.totalorder %s20, 1
    %p143 = scmp.ne.s32.totalorder %s138, %s140
    %p144 = scmp.eq.s32.totalorder %s20, 0
    %p145 = por %p143, %p144
    %p146 = scmp.ne.s32.totalorder %s138, %s140
    %p147 = scmp.eq.s32.totalorder %s25, 1
    %p148 = por %p146, %p147
    %p149 = scmp.ne.s32.totalorder %s140, %s141
    %p150 = scmp.eq.s32.totalorder %s25, 0
    %p151 = por %p149, %p150
    %p152 = scmp.ne.s32.totalorder %s140, %s141
    %p153 = scmp.eq.s32.totalorder %s26, 1
    %p154 = por %p152, %p153
    %p156 = scmp.ne.s32.totalorder %s141, %s155
    %p157 = scmp.eq.s32.totalorder %s26, 0
    %p158 = por %p156, %p157
    %s160 = sadd.s32 %s159, 1
    %p163 = scmp.eq.s32.totalorder %s20, 1
    %p164 = scmp.ne.s32.totalorder %s159, %s161
    %p165 = scmp.eq.s32.totalorder %s20, 0
    %p166 = por %p164, %p165
    %p167 = scmp.ne.s32.totalorder %s159, %s161
    %p168 = scmp.eq.s32.totalorder %s25, 1
    %p169 = por %p167, %p168
    %p170 = scmp.ne.s32.totalorder %s161, %s162
    %p171 = scmp.eq.s32.totalorder %s25, 0
    %p172 = por %p170, %p171
    %p173 = scmp.ne.s32.totalorder %s161, %s162
    %p174 = scmp.eq.s32.totalorder %s26, 1
    %p175 = por %p173, %p174
    %p177 = scmp.ne.s32.totalorder %s162, %s176
    %p178 = scmp.eq.s32.totalorder %s26, 0
    %p179 = por %p177, %p178
    %s181 = sadd.s32 %s180, 1
    %p184 = scmp.eq.s32.totalorder %s20, 1
    %p185 = scmp.ne.s32.totalorder %s180, %s182
    %p186 = scmp.eq.s32.totalorder %s20, 0
    %p187 = por %p185, %p186
    %p188 = scmp.ne.s32.totalorder %s180, %s182
    %p189 = scmp.eq.s32.totalorder %s25, 1
    %p190 = por %p188, %p189
    %p191 = scmp.ne.s32.totalorder %s182, %s183
    %p192 = scmp.eq.s32.totalorder %s25, 0
    %p193 = por %p191, %p192
    %p194 = scmp.ne.s32.totalorder %s182, %s183
    %p195 = scmp.eq.s32.totalorder %s26, 1
    %p196 = por %p194, %p195
    %p198 = scmp.ne.s32.totalorder %s183, %s197
    %p199 = scmp.eq.s32.totalorder %s26, 0
    %p200 = por %p198, %p199
    %s202 = sadd.s32 %s201, 1
    %p205 = scmp.eq.s32.totalorder %s20, 1
    %p206 = scmp.ne.s32.totalorder %s201, %s203
    %p207 = scmp.eq.s32.totalorder %s20, 0
    %p208 = por %p206, %p207
    %p209 = scmp.ne.s32.totalorder %s201, %s203
    %p210 = scmp.eq.s32.totalorder %s25, 1
    %p211 = por %p209, %p210
    %p212 = scmp.ne.s32.totalorder %s203, %s204
    %p213 = scmp.eq.s32.totalorder %s25, 0
    %p214 = por %p212, %p213
    %p215 = scmp.ne.s32.totalorder %s203, %s204
    %p216 = scmp.eq.s32.totalorder %s26, 1
    %p217 = por %p215, %p216
    %p219 = scmp.ne.s32.totalorder %s204, %s218
    %p220 = scmp.eq.s32.totalorder %s26, 0
    %p221 = por %p219, %p220
    %s223 = sadd.s32 %s222, 1
    %p226 = scmp.eq.s32.totalorder %s20, 1
    %p227 = scmp.ne.s32.totalorder %s222, %s224
    %p228 = scmp.eq.s32.totalorder %s20, 0
    %p229 = por %p227, %p228
    %p230 = scmp.ne.s32.totalorder %s222, %s224
    %p231 = scmp.eq.s32.totalorder %s25, 1
    %p232 = por %p230, %p231
    %p233 = scmp.ne.s32.totalorder %s224, %s225
    %p234 = scmp.eq.s32.totalorder %s25, 0
    %p235 = por %p233, %p234
    %p236 = scmp.ne.s32.totalorder %s224, %s225
    %p237 = scmp.eq.s32.totalorder %s26, 1
    %p238 = por %p236, %p237
    %p240 = scmp.ne.s32.totalorder %s225, %s239
    %p241 = scmp.eq.s32.totalorder %s26, 0
    %p242 = por %p240, %p241
    %s244 = sadd.s32 %s243, 1
    %p247 = scmp.eq.s32.totalorder %s20, 1
    %p248 = scmp.ne.s32.totalorder %s243, %s245
    %p249 = scmp.eq.s32.totalorder %s20, 0
    %p250 = por %p248, %p249
    %p251 = scmp.ne.s32.totalorder %s243, %s245
    %p252 = scmp.eq.s32.totalorder %s25, 1
    %p253 = por %p251, %p252
    %p254 = scmp.ne.s32.totalorder %s245, %s246
    %p255 = scmp.eq.s32.totalorder %s25, 0
    %p256 = por %p254, %p255
    %p257 = scmp.ne.s32.totalorder %s245, %s246
    %p258 = scmp.eq.s32.totalorder %s26, 1
    %p259 = por %p257, %p258
    %p261 = scmp.ne.s32.totalorder %s246, %s260
    %p262 = scmp.eq.s32.totalorder %s26, 0
    %p263 = por %p261, %p262
    %s265 = sadd.s32 %s264, 1
    %p268 = scmp.eq.s32.totalorder %s20, 1
    %p269 = scmp.ne.s32.totalorder %s264, %s266
    %p270 = scmp.eq.s32.totalorder %s20, 0
    %p271 = por %p269, %p270
    %p272 = scmp.ne.s32.totalorder %s264, %s266
    %p273 = scmp.eq.s32.totalorder %s25, 1
    %p274 = por %p272, %p273
    %p275 = scmp.ne.s32.totalorder %s266, %s267
    %p276 = scmp.eq.s32.totalorder %s25, 0
    %p277 = por %p275, %p276
    %p278 = scmp.ne.s32.totalorder %s266, %s267
    %p279 = scmp.eq.s32.totalorder %s26, 1
    %p280 = por %p278, %p279
    %p282 = scmp.ne.s32.totalorder %s267, %s281
    %p283 = scmp.eq.s32.totalorder %s26, 0
    %p284 = por %p282, %p283
    %s286 = sadd.s32 %s285, 1
    %p289 = scmp.eq.s32.totalorder %s20, 1
    %p290 = scmp.ne.s32.totalorder %s285, %s287
    %p291 = scmp.eq.s32.totalorder %s20, 0
    %p292 = por %p290, %p291
    %p293 = scmp.ne.s32.totalorder %s285, %s287
    %p294 = scmp.eq.s32.totalorder %s25, 1
    %p295 = por %p293, %p294
    %p296 = scmp.ne.s32.totalorder %s287, %s288
    %p297 = scmp.eq.s32.totalorder %s25, 0
    %p298 = por %p296, %p297
    %p299 = scmp.ne.s32.totalorder %s287, %s288
    %p300 = scmp.eq.s32.totalorder %s26, 1
    %p301 = por %p299, %p300
    %p303 = scmp.ne.s32.totalorder %s288, %s302
    %p304 = scmp.eq.s32.totalorder %s26, 0
    %p305 = por %p303, %p304
    %s307 = sadd.s32 %s306, 1
    %p310 = scmp.eq.s32.totalorder %s20, 1
    %p311 = scmp.ne.s32.totalorder %s306, %s308
    %p312 = scmp.eq.s32.totalorder %s20, 0
    %p313 = por %p311, %p312
    %p314 = scmp.ne.s32.totalorder %s306, %s308
    %p315 = scmp.eq.s32.totalorder %s25, 1
    %p316 = por %p314, %p315
    %p317 = scmp.ne.s32.totalorder %s308, %s309
    %p318 = scmp.eq.s32.totalorder %s25, 0
    %p319 = por %p317, %p318
    %p320 = scmp.ne.s32.totalorder %s308, %s309
    %p321 = scmp.eq.s32.totalorder %s26, 1
    %p322 = por %p320, %p321
    %p324 = scmp.ne.s32.totalorder %s309, %s323
    %p325 = scmp.eq.s32.totalorder %s26, 0
    %p326 = por %p324, %p325
    %s327 = ssub.s32 %s20, %s27
    %p328 = scmp.eq.s32.totalorder %s327, 0
    %s330 = sadd.s32 %s329, 1
    %s331 = scalar_select %p328, %s329, %s330
    %p334 = pneg %p328
    %p335 = scmp.eq.s32.totalorder %s20, 1
    %p336 = por %p334, %p335
    %p337 = scmp.ne.s32.totalorder %s329, %s332
    %p338 = scmp.eq.s32.totalorder %s20, 0
    %p339 = por %p337, %p338
    %p340 = scmp.ne.s32.totalorder %s329, %s332
    %p341 = scmp.eq.s32.totalorder %s25, 1
    %p342 = por %p340, %p341
    %p343 = scmp.ne.s32.totalorder %s332, %s333
    %p344 = scmp.eq.s32.totalorder %s25, 0
    %p345 = por %p343, %p344
    %p346 = scmp.ne.s32.totalorder %s332, %s333
    %p347 = scmp.eq.s32.totalorder %s26, 1
    %p348 = por %p346, %p347
    %p350 = scmp.ne.s32.totalorder %s333, %s349
    %p351 = scmp.eq.s32.totalorder %s26, 0
    %p352 = por %p350, %p351
    %p353 = scmp.le.s32.totalorder 1, %s20
    %p354 = scmp.lt.s32.totalorder %s20, 3
    %p355 = pnand %p353, %p354
    %p356 = pneg %p355
    // Predicated region
    $region9: #{decoder_forward.1} parent=5 // pred_check
      _
    $region10: #{decoder_forward.1} parent=5 // pred_check_branch
      %358 = sbr.rel (%p355) target = $region12
    $region11: #{decoder_forward.1} parent=5 // pred_region
      %s359 = ssub.s32 %s20, 1
      // Predicated region
      $region13: #{decoder_forward.1} parent=11 // pred_check
        %p360 = pneg %p67
      $region14: #{decoder_forward.1} parent=11 // pred_check_branch
        %362 = sbr.rel (%p360) target = $region16
      $region15: #{decoder_forward.1} parent=11 // pred_region
        _
      $region16: #{decoder_forward.1} parent=11 // pred_fallthru
        _
      // Predicated region
      $region17: #{decoder_forward.1} parent=11 // pred_check
        %p363 = pneg %p88
      $region18: #{decoder_forward.1} parent=11 // pred_check_branch
        %365 = sbr.rel (%p363) target = $region20
      $region19: #{decoder_forward.1} parent=11 // pred_region
        _
      $region20: #{decoder_forward.1} parent=11 // pred_fallthru
        _
      // Predicated region
      $region21: #{decoder_forward.1} parent=11 // pred_check
        %p366 = pneg %p109
      $region22: #{decoder_forward.1} parent=11 // pred_check_branch
        %368 = sbr.rel (%p366) target = $region24
      $region23: #{decoder_forward.1} parent=11 // pred_region
        _
      $region24: #{decoder_forward.1} parent=11 // pred_fallthru
        _
      // Predicated region
      $region25: #{decoder_forward.1} parent=11 // pred_check
        %p369 = pneg %p130
      $region26: #{decoder_forward.1} parent=11 // pred_check_branch
        %371 = sbr.rel (%p369) target = $region28
      $region27: #{decoder_forward.1} parent=11 // pred_region
        _
      $region28: #{decoder_forward.1} parent=11 // pred_fallthru
        _
      // Predicated region
      $region29: #{decoder_forward.1} parent=11 // pred_check
        %p372 = pneg %p151
      $region30: #{decoder_forward.1} parent=11 // pred_check_branch
        %374 = sbr.rel (%p372) target = $region32
      $region31: #{decoder_forward.1} parent=11 // pred_region
        _
      $region32: #{decoder_forward.1} parent=11 // pred_fallthru
        _
      // Predicated region
      $region33: #{decoder_forward.1} parent=11 // pred_check
        %p375 = pneg %p172
      $region34: #{decoder_forward.1} parent=11 // pred_check_branch
        %377 = sbr.rel (%p375) target = $region36
      $region35: #{decoder_forward.1} parent=11 // pred_region
        _
      $region36: #{decoder_forward.1} parent=11 // pred_fallthru
        _
      // Predicated region
      $region37: #{decoder_forward.1} parent=11 // pred_check
        %p378 = pneg %p193
      $region38: #{decoder_forward.1} parent=11 // pred_check_branch
        %380 = sbr.rel (%p378) target = $region40
      $region39: #{decoder_forward.1} parent=11 // pred_region
        _
      $region40: #{decoder_forward.1} parent=11 // pred_fallthru
        _
      // Predicated region
      $region41: #{decoder_forward.1} parent=11 // pred_check
        %p381 = pneg %p214
      $region42: #{decoder_forward.1} parent=11 // pred_check_branch
        %383 = sbr.rel (%p381) target = $region44
      $region43: #{decoder_forward.1} parent=11 // pred_region
        _
      $region44: #{decoder_forward.1} parent=11 // pred_fallthru
        _
      // Predicated region
      $region45: #{decoder_forward.1} parent=11 // pred_check
        %p384 = pneg %p235
      $region46: #{decoder_forward.1} parent=11 // pred_check_branch
        %386 = sbr.rel (%p384) target = $region48
      $region47: #{decoder_forward.1} parent=11 // pred_region
        _
      $region48: #{decoder_forward.1} parent=11 // pred_fallthru
        _
      // Predicated region
      $region49: #{decoder_forward.1} parent=11 // pred_check
        %p387 = pneg %p256
      $region50: #{decoder_forward.1} parent=11 // pred_check_branch
        %389 = sbr.rel (%p387) target = $region52
      $region51: #{decoder_forward.1} parent=11 // pred_region
        _
      $region52: #{decoder_forward.1} parent=11 // pred_fallthru
        _
      // Predicated region
      $region53: #{decoder_forward.1} parent=11 // pred_check
        %p390 = pneg %p277
      $region54: #{decoder_forward.1} parent=11 // pred_check_branch
        %392 = sbr.rel (%p390) target = $region56
      $region55: #{decoder_forward.1} parent=11 // pred_region
        _
      $region56: #{decoder_forward.1} parent=11 // pred_fallthru
        _
      // Predicated region
      $region57: #{decoder_forward.1} parent=11 // pred_check
        %p393 = pneg %p298
      $region58: #{decoder_forward.1} parent=11 // pred_check_branch
        %395 = sbr.rel (%p393) target = $region60
      $region59: #{decoder_forward.1} parent=11 // pred_region
        _
      $region60: #{decoder_forward.1} parent=11 // pred_fallthru
        _
      // Predicated region
      $region61: #{decoder_forward.1} parent=11 // pred_check
        %p396 = pneg %p319
      $region62: #{decoder_forward.1} parent=11 // pred_check_branch
        %398 = sbr.rel (%p396) target = $region64
      $region63: #{decoder_forward.1} parent=11 // pred_region
        _
      $region64: #{decoder_forward.1} parent=11 // pred_fallthru
        _
    $region12: #{decoder_forward.1} parent=5 // pred_fallthru
      _
    %p399 = scmp.lt.s32.totalorder %s20, 2
    // Predicated region
    $region65: #{decoder_forward.1} parent=5 // pred_check
      %p400 = pneg %p399
    $region66: #{decoder_forward.1} parent=5 // pred_check_branch
      %402 = sbr.rel (%p400) target = $region68
    $region67: #{decoder_forward.1} parent=5 // pred_region
      // Predicated region
      $region69: #{decoder_forward.1} parent=67 // pred_check
        %p403 = pneg %p40
      $region70: #{decoder_forward.1} parent=67 // pred_check_branch
        %405 = sbr.rel (%p403) target = $region72
      $region71: #{decoder_forward.1} parent=67 // pred_region
        %p406 = scmp.lt.s32.totalorder %s20, 1
        %s407 = scalar_select %p406, %s20, 1
        %s408 = smul.addr %s407, 4
        %s409 = smul.addr %s408, 8
        %s410 = scalar_lea.vmem %s0, %s409
      $region72: #{decoder_forward.1} parent=67 // pred_fallthru
        _
    $region68: #{decoder_forward.1} parent=5 // pred_fallthru
      _
    %p411 = scmp.le.s32.totalorder 1, %s20
    %p412 = scmp.lt.s32.totalorder %s20, 3
    %p413 = pnand %p411, %p412
    %p414 = pneg %p413
    // Predicated region
    $region73: #{decoder_forward.1} parent=5 // pred_check
      _
    $region74: #{decoder_forward.1} parent=5 // pred_check_branch
      %416 = sbr.rel (%p413) target = $region76
    $region75: #{decoder_forward.1} parent=5 // pred_region
      %s417 = ssub.s32 %s20, 1
      %p418 = scmp.lt.s32.totalorder %s25, 1
      %s419 = scalar_select %p418, %s25, 1
      %s420 = smul.addr %s419, 4
      %s421 = smul.addr %s420, 8
      %s422 = scalar_lea.vmem %s0, %s421
      %p423 = pneg %p46
      %p424 = pneg %p43
      %p425 = pneg %p67
      %p426 = pneg %p64
      %p427 = pneg %p88
      %p428 = pneg %p85
      %p429 = pneg %p109
      %p430 = pneg %p106
      %p431 = pneg %p130
      %p432 = pneg %p127
      %p433 = pneg %p151
      %p434 = pneg %p148
      %p435 = pneg %p172
      %p436 = pneg %p169
      %p437 = pneg %p193
      %p438 = pneg %p190
      %p439 = pneg %p214
      %p440 = pneg %p211
      %p441 = pneg %p235
      %p442 = pneg %p232
      %p443 = pneg %p256
      %p444 = pneg %p253
      %p445 = pneg %p277
      %p446 = pneg %p274
      %p447 = pneg %p298
      %p448 = pneg %p295
      %p449 = pneg %p319
      %p450 = pneg %p316
      %p451 = pneg %p345
      %p452 = pneg %p342
      %p453 = scmp.lt.s32.totalorder %s25, 1
      %s454 = scalar_select %p453, %s25, 1
      %s455 = smul.addr %s454, 2
      %s456 = scalar_lea.vmem %s14, %s455
      %p457 = scmp.lt.s32.totalorder %s25, 1
      %s458 = scalar_select %p457, %s25, 1
      %s459 = smul.addr %s458, 4
      %s460 = smul.addr %s459, 8
      %s461 = scalar_lea.vmem %s0, %s460
      %p462 = scmp.lt.s32.totalorder %s25, 1
      %s463 = scalar_select %p462, %s25, 1
      %s464 = smul.addr %s463, 2
      %s465 = scalar_lea.vmem %s14, %s464
      %v467 = vld [vmem:[%s461] sm:$0xff]
      %v468 = vld [vmem:[%s461 + $0x8] sm:$0xff]
      %v469 = vld [vmem:[%s461 + $0x10] sm:$0xff]
      %v470 = vld [vmem:[%s461 + $0x18] sm:$0xff]
      %v471 = vlaneseq
      %v472 = vshrl.u32 %v471, 7
      %v473 = vadd.s32 %v472, 8
      %v474 = vadd.s32 %v472, 16
      %v475 = vadd.s32 %v472, 24
      %vm476 = vcmp.eq.s32.totalorder %v472, 0
      %vm477 = vcmp.eq.s32.totalorder %v473, 0
      %vm478 = vcmp.eq.s32.totalorder %v474, 0
      %vm479 = vcmp.eq.s32.totalorder %v475, 0
      %v480 = vrot.slane %v467, 7
      %v481 = vrot.slane %v468, 7
      %v482 = vrot.slane %v469, 7
      %v483 = vrot.slane %v470, 7
      %vm484 = vcmp.lt.s32.totalorder %v472, 1
      %v485 = vsel %vm484, %v482, %v483
      %v486 = vsel %vm484, %v481, %v482
      %v487 = vsel %vm484, %v480, %v481
      %v488 = vsel %vm484, %v483, %v480
      %v489 = vsel %vm476, 0.0, %v488
      %v490 = vsel %vm477, 0.0, %v487
      %v491 = vsel %vm478, 0.0, %v486
      %v492 = vsel %vm479, 0.0, %v485
      %vm493 = vcmp.eq.s32.totalorder %v472, 31
      %vm494 = vcmp.eq.s32.totalorder %v473, 31
      %vm495 = vcmp.eq.s32.totalorder %v474, 31
      %vm496 = vcmp.eq.s32.totalorder %v475, 31
      %v497 = vrot.slane %v467, 1
      %v498 = vrot.slane %v468, 1
      %v499 = vrot.slane %v469, 1
      %v500 = vrot.slane %v470, 1
      %vm501 = vcmp.lt.s32.totalorder %v472, 7
      %v502 = vsel %vm501, %v499, %v500
      %v503 = vsel %vm501, %v498, %v499
      %v504 = vsel %vm501, %v497, %v498
      %v505 = vsel %vm501, %v500, %v497
      %v506 = vsel %vm493, 0.0, %v504
      %v507 = vsel %vm494, 0.0, %v503
      %v508 = vsel %vm495, 0.0, %v502
      %v509 = vsel %vm496, 0.0, %v505
      %v510 = vld [vmem:[%s1] sm:$0xf]
      %v511 = vld [vmem:[%s1 + $0x4] sm:$0x3]
      %v512 = vld [vmem:[%s2] sm:$0xf]
      %517 = vrot.lane.b32.xlu0 %v467, 4
      %v518 = vpop.permute.xlu0 %517
      %519 = vrot.lane.b32.xlu0 %v468, 4
      %v520 = vpop.permute.xlu0 %519
      %521 = vrot.lane.b32.xlu0 %v469, 4
      %v522 = vpop.permute.xlu0 %521
      %523 = vrot.lane.b32.xlu0 %v470, 4
      %v524 = vpop.permute.xlu0 %523
      %533 = vrot.lane.b32.xlu0 %v506, 8
      %v534 = vpop.permute.xlu0 %533
      %535 = vrot.lane.b32.xlu0 %v507, 8
      %v536 = vpop.permute.xlu0 %535
      %537 = vrot.lane.b32.xlu0 %v508, 8
      %v538 = vpop.permute.xlu0 %537
      %539 = vrot.lane.b32.xlu0 %v509, 8
      %v540 = vpop.permute.xlu0 %539
      %vm545 = vcmask 31744
      %v546 = vsel %vm545, %v489, %v518
      %v547 = vsel %vm545, %v490, %v520
      %v548 = vsel %vm545, %v491, %v522
      %v549 = vsel %vm545, %v492, %v524
      %vm550 = vcmask 64512
      %v551 = vsel %vm550, %v546, %v534
      %v552 = vsel %vm550, %v547, %v536
      %v553 = vsel %vm550, %v548, %v538
      %v554 = vsel %vm550, %v549, %v540
      %v555 = vpack.c.bf16 %v552, %v551
      %v556 = vpack.c.bf16 %v554, %v553
      %v557 = vlaneseq
      %v558 = vshrl.u32 %v557, 7
      %v559 = vsub.s32 0, %v558
      %v560 = vrot.slane %v512, %v559
      %v563 = vunpack.c.l.b16 %v510
      %v564 = vunpack.c.l.b16 %v511
      %v565 = vpack.c.b16 %v564, %v563
      %vm566 = vcmask 97280
      %v568 = vsel %vm566, %v555, 0
      %v571 = vsel %vm566, %v556, 0
      %vm573 = vcmask 1045504
      %v575 = vsel %vm573, %v565, 0
      %577 = vmatprep.subr.bf16.mxu0 0
      %578 = vmatpush1.bf16.msra.mxu0 %v575
      %579 = vmatprep.subr.bf16.mxu0 0
      %580 = vmatpush1.bf16.msra.mxu0 0
      %581 = vmatprep.subr.bf16.mxu0 0
      %582 = vmatpush1.bf16.msra.mxu0 0
      %583 = vmatprep.subr.bf16.mxu0 0
      %584 = vmatpush1.bf16.msra.mxu0 0
      %585 = vmatprep.subr.bf16.mxu0 0
      %586 = vmatpush1.bf16.msra.mxu0 0
      %587 = vmatprep.subr.bf16.mxu0 0
      %588 = vmatpush1.bf16.msra.mxu0 0
      %589 = vmatprep.subr.bf16.mxu0 0
      %590 = vmatpush1.bf16.msra.mxu0 0
      %591 = vmatprep.subr.bf16.mxu0 0
      %592 = vmatpush1.bf16.msra.mxu0 0
      %593 = vmatprep.subr.bf16.mxu0 0
      %594 = vmatpush1.bf16.msra.mxu0 0
      %595 = vmatprep.subr.bf16.mxu0 0
      %596 = vmatpush1.bf16.msra.mxu0 0
      %597 = vmatprep.subr.bf16.mxu0 0
      %598 = vmatpush1.bf16.msra.mxu0 0
      %599 = vmatprep.subr.bf16.mxu0 0
      %600 = vmatpush1.bf16.msra.mxu0 0
      %601 = vmatprep.subr.bf16.mxu0 0
      %602 = vmatpush1.bf16.msra.mxu0 0
      %603 = vmatprep.subr.bf16.mxu0 0
      %604 = vmatpush1.bf16.msra.mxu0 0
      %605 = vmatprep.subr.bf16.mxu0 0
      %606 = vmatpush1.bf16.msra.mxu0 0
      %607 = vmatprep.subr.bf16.mxu0 0
      %608 = vmatpush1.bf16.msra.mxu0 0
      %609 = vmatprep.mubr.bf16.mxu0 0
      %610 = vmatmul.mubr.bf16.gmra.mrb[0].mxu0 %v568
      %v611 = vpop.f32.mrb[0].mxu0
      %v612 = vadd.f32 %v560, %v611
      %v613 = vpop.f32.mrb[0].mxu0
      %v614 = vpop.f32.mrb[0].mxu0
      %v615 = vadd.f32 %v560, %v614
      %v616 = vpop.f32.mrb[0].mxu0
      %617 = vmatprep.mubr.bf16.mxu0 0
      %618 = vmatmul.mubr.bf16.gmra.mrb[0].mxu0 %v571
      %v619 = vpop.f32.mrb[0].mxu0
      %v620 = vadd.f32 %v560, %v619
      %v621 = vpop.f32.mrb[0].mxu0
      %v622 = vpop.f32.mrb[0].mxu0
      %v623 = vadd.f32 %v560, %v622
      %v624 = vpop.f32.mrb[0].mxu0
      %625 = vdwg.mxu0
      %vm626 = vcmask 261120
      %v627 = vsel %vm626, %v612, 0.0
      %v628 = vsel %vm626, %v615, 0.0
      %v629 = vadd.f32 %v627, %v628
      %v630 = vsel %vm626, %v620, 0.0
      %v631 = vadd.f32 %v629, %v630
      %v632 = vsel %vm626, %v623, 0.0
      %v633 = vadd.f32 %v631, %v632
      %v634 = vrot.slane %v633, 4
      %v635 = vadd.f32 %v633, %v634
      %v636 = vrot.slane %v635, 2
      %v637 = vadd.f32 %v635, %v636
      %v638 = vrot.slane %v637, 1
      %v639 = vadd.f32 %v637, %v638
      %v640 = vmul.f32 %v612, %v612
      %v641 = vmul.f32 %v615, %v615
      %v642 = vmul.f32 %v620, %v620
      %v643 = vmul.f32 %v623, %v623
      %v644 = vsel %vm626, %v640, 0.0
      %v645 = vsel %vm626, %v641, 0.0
      %v646 = vadd.f32 %v644, %v645
      %v647 = vsel %vm626, %v642, 0.0
      %v648 = vadd.f32 %v646, %v647
      %v649 = vsel %vm626, %v643, 0.0
      %v650 = vadd.f32 %v648, %v649
      %v651 = vrot.slane %v650, 4
      %v652 = vadd.f32 %v650, %v651
      %v653 = vrot.slane %v652, 2
      %v654 = vadd.f32 %v652, %v653
      %v655 = vrot.slane %v654, 1
      %v656 = vadd.f32 %v654, %v655
      %v657 = vsel %vm626, %v639, 0.0
      %658 = vadd.xlane.f32.xlu0 %v657
      %v659 = vpop.xlane.xlu0 %658
      %v660 = vrcp.pop 1024.0
      %v661 = vmul.f32 %v659, %v660
      %v662 = vsel %vm626, %v656, 0.0
      %663 = vadd.xlane.f32.xlu0 %v662
      %v664 = vpop.xlane.xlu0 %663
      %v665 = vmul.f32 %v664, %v660
      %v666 = vmul.f32 %v661, %v661
      %v667 = vsub.f32 %v665, %v666
      %v668 = vadd.f32 %v667, 1e-05
      %v669 = vrsqrt.pop %v668
      %v670 = vmul.f32 %v669, %v512
      %v671 = vlaneseq
      %v672 = vshrl.u32 %v671, 7
      %v673 = vsub.s32 1, %v672
      %v674 = vrot.slane %v670, %v673
      %v675 = vmul.f32 %v612, %v674
      %v676 = vmul.f32 %v615, %v674
      %v677 = vmul.f32 %v620, %v674
      %v678 = vmul.f32 %v623, %v674
      %v679 = vmul.f32 %v661, %v670
      %v681 = vrot.slane %v679, 7
      %v683 = vsub.f32 %v512, %v681
      %v684 = vlaneseq
      %v685 = vshrl.u32 %v684, 7
      %v686 = vsub.s32 2, %v685
      %v687 = vrot.slane %v683, %v686
      %v688 = vadd.f32 %v675, %v687
      %v689 = vadd.f32 %v676, %v687
      %v690 = vadd.f32 %v677, %v687
      %v691 = vadd.f32 %v678, %v687
      %v692 = vld [vmem:[%s3] sm:$0x3]
      %v693 = vpack.c.bf16 %v468, %v467
      %v694 = vpack.c.bf16 %v470, %v469
      %v695 = vlaneseq
      %v696 = vshrl.u32 %v695, 7
      %v697 = vsub.s32 3, %v696
      %v698 = vrot.slane %v512, %v697
      %v700 = vsel %vm545, %v693, 0
      %v703 = vsel %vm545, %v694, 0
      %vm705 = vcmask 1041408
      %v707 = vsel %vm705, %v692, 0
      %709 = vmatprep.subr.bf16.mxu0 0
      %710 = vmatpush1.bf16.msra.mxu0 %v707
      %711 = vmatprep.subr.bf16.mxu0 0
      %712 = vmatpush1.bf16.msra.mxu0 0
      %713 = vmatprep.subr.bf16.mxu0 0
      %714 = vmatpush1.bf16.msra.mxu0 0
      %715 = vmatprep.subr.bf16.mxu0 0
      %716 = vmatpush1.bf16.msra.mxu0 0
      %717 = vmatprep.subr.bf16.mxu0 0
      %718 = vmatpush1.bf16.msra.mxu0 0
      %719 = vmatprep.subr.bf16.mxu0 0
      %720 = vmatpush1.bf16.msra.mxu0 0
      %721 = vmatprep.subr.bf16.mxu0 0
      %722 = vmatpush1.bf16.msra.mxu0 0
      %723 = vmatprep.subr.bf16.mxu0 0
      %724 = vmatpush1.bf16.msra.mxu0 0
      %725 = vmatprep.subr.bf16.mxu0 0
      %726 = vmatpush1.bf16.msra.mxu0 0
      %727 = vmatprep.subr.bf16.mxu0 0
      %728 = vmatpush1.bf16.msra.mxu0 0
      %729 = vmatprep.subr.bf16.mxu0 0
      %730 = vmatpush1.bf16.msra.mxu0 0
      %731 = vmatprep.subr.bf16.mxu0 0
      %732 = vmatpush1.bf16.msra.mxu0 0
      %733 = vmatprep.subr.bf16.mxu0 0
      %734 = vmatpush1.bf16.msra.mxu0 0
      %735 = vmatprep.subr.bf16.mxu0 0
      %736 = vmatpush1.bf16.msra.mxu0 0
      %737 = vmatprep.subr.bf16.mxu0 0
      %738 = vmatpush1.bf16.msra.mxu0 0
      %739 = vmatprep.subr.bf16.mxu0 0
      %740 = vmatpush1.bf16.msra.mxu0 0
      %741 = vmatprep.mubr.bf16.mxu0 0
      %742 = vmatmul.mubr.bf16.gmra.mrb[0].mxu0 %v700
      %v743 = vpop.f32.mrb[0].mxu0
      %v744 = vadd.f32 %v698, %v743
      %v745 = vpop.f32.mrb[0].mxu0
      %v746 = vpop.f32.mrb[0].mxu0
      %v747 = vadd.f32 %v698, %v746
      %v748 = vpop.f32.mrb[0].mxu0
      %749 = vmatprep.mubr.bf16.mxu0 0
      %750 = vmatmul.mubr.bf16.gmra.mrb[0].mxu0 %v703
      %v751 = vpop.f32.mrb[0].mxu0
      %v752 = vadd.f32 %v698, %v751
      %v753 = vpop.f32.mrb[0].mxu0
      %v754 = vpop.f32.mrb[0].mxu0
      %v755 = vadd.f32 %v698, %v754
      %v756 = vpop.f32.mrb[0].mxu0
      %757 = vdwg.mxu0
      %v758 = vadd.f32 %v688, %v744
      %v759 = vadd.f32 %v689, %v747
      %v760 = vadd.f32 %v690, %v752
      %v761 = vadd.f32 %v691, %v755
      %v762 = vmax.f32 %v758, 0.0
      %v763 = vmax.f32 %v759, 0.0
      %v764 = vmax.f32 %v760, 0.0
      %v765 = vmax.f32 %v761, 0.0
      %v766 = vrot.slane %v762, 7
      %v767 = vrot.slane %v763, 7
      %v768 = vrot.slane %v764, 7
      %v769 = vrot.slane %v765, 7
      %v770 = vsel %vm484, %v768, %v769
      %v771 = vsel %vm484, %v767, %v768
      %v772 = vsel %vm484, %v766, %v767
      %v773 = vsel %vm484, %v769, %v766
      %v774 = vsel %vm476, 0.0, %v773
      %v775 = vsel %vm477, 0.0, %v772
      %v776 = vsel %vm478, 0.0, %v771
      %v777 = vsel %vm479, 0.0, %v770
      %v778 = vrot.slane %v762, 1
      %v779 = vrot.slane %v763, 1
      %v780 = vrot.slane %v764, 1
      %v781 = vrot.slane %v765, 1
      %v782 = vsel %vm501, %v780, %v781
      %v783 = vsel %vm501, %v779, %v780
      %v784 = vsel %vm501, %v778, %v779
      %v785 = vsel %vm501, %v781, %v778
      %v786 = vsel %vm493, 0.0, %v784
      %v787 = vsel %vm494, 0.0, %v783
      %v788 = vsel %vm495, 0.0, %v782
      %v789 = vsel %vm496, 0.0, %v785
      %v790 = vld [vmem:[%s4] sm:$0xf]
      %v791 = vld [vmem:[%s4 + $0x4] sm:$0xf]
      %v792 = vld [vmem:[%s4 + $0x8] sm:$0xf]
      %v793 = vld [vmem:[%s4 + $0xc] sm:$0xf]
      %v794 = vld [vmem:[%s4 + $0x10] sm:$0xf]
      %v795 = vld [vmem:[%s4 + $0x14] sm:$0xf]
      %v796 = vld [vmem:[%s4 + $0x18] sm:$0xf]
      %v797 = vld [vmem:[%s4 + $0x1c] sm:$0xf]
      %v798 = vld [vmem:[%s4 + $0x20] sm:$0xf]
      %v799 = vld [vmem:[%s4 + $0x24] sm:$0xf]
      %v800 = vld [vmem:[%s4 + $0x28] sm:$0xf]
      %v801 = vld [vmem:[%s4 + $0x2c] sm:$0xf]
      %v802 = vld [vmem:[%s5] sm:$0x7]
      %807 = vrot.lane.b32.xlu0 %v762, 32
      %v808 = vpop.permute.xlu0 %807
      %809 = vrot.lane.b32.xlu0 %v763, 32
      %v810 = vpop.permute.xlu0 %809
      %811 = vrot.lane.b32.xlu0 %v764, 32
      %v812 = vpop.permute.xlu0 %811
      %813 = vrot.lane.b32.xlu0 %v765, 32
      %v814 = vpop.permute.xlu0 %813
      %823 = vrot.lane.b32.xlu0 %v786, 64
      %v824 = vpop.permute.xlu0 %823
      %825 = vrot.lane.b32.xlu0 %v787, 64
      %v826 = vpop.permute.xlu0 %825
      %827 = vrot.lane.b32.xlu0 %v788, 64
      %v828 = vpop.permute.xlu0 %827
      %829 = vrot.lane.b32.xlu0 %v789, 64
      %v830 = vpop.permute.xlu0 %829
      %v835 = vsel %vm626, %v774, %v808
      %v836 = vsel %vm626, %v775, %v810
      %v837 = vsel %vm626, %v776, %v812
      %v838 = vsel %vm626, %v777, %v814
      %vm839 = vcmask 523264
      %v840 = vsel %vm839, %v835, %v824
      %v841 = vsel %vm839, %v836, %v826
      %v842 = vsel %vm839, %v837, %v828
      %v843 = vsel %vm839, %v838, %v830
      %v844 = vpack.c.bf16 %v841, %v840
      %v845 = vpack.c.bf16 %v843, %v842
      %v846 = vlaneseq
      %v847 = vshrl.u32 %v846, 7
      %v848 = vsub.s32 0, %v847
      %v849 = vrot.slane %v802, %v848
      %v862 = vunpack.c.l.b16 %v790
      %v863 = vunpack.c.l.b16 %v791
      %v864 = vunpack.c.l.b16 %v792
      %v865 = vunpack.c.l.b16 %v793
      %v866 = vunpack.c.l.b16 %v794
      %v867 = vunpack.c.l.b16 %v795
      %v868 = vunpack.c.l.b16 %v796
      %v869 = vunpack.c.l.b16 %v797
      %v870 = vunpack.c.l.b16 %v798
      %v871 = vunpack.c.l.b16 %v799
      %v872 = vunpack.c.l.b16 %v800
      %v873 = vunpack.c.l.b16 %v801
      %v874 = vpack.c.b16 %v863, %v862
      %v875 = vpack.c.b16 %v865, %v864
      %v876 = vpack.c.b16 %v867, %v866
      %v877 = vpack.c.b16 %v869, %v868
      %v878 = vpack.c.b16 %v871, %v870
      %v879 = vpack.c.b16 %v873, %v872
      %vm886 = vcmask 785408
      %v888 = vsel %vm886, %v844, 0
      %v891 = vsel %vm886, %v845, 0
      %893 = vmatprep.subr.bf16.mxu0 0
      %894 = vmatpush1.bf16.msra.mxu0 %v874
      %895 = vmatprep.subr.bf16.mxu0 0
      %896 = vmatpush1.bf16.msra.mxu0 %v875
      %897 = vmatprep.subr.bf16.mxu0 0
      %898 = vmatpush1.bf16.msra.mxu0 %v876
      %899 = vmatprep.subr.bf16.mxu0 0
      %900 = vmatpush1.bf16.msra.mxu0 %v877
      %901 = vmatprep.subr.bf16.mxu0 0
      %902 = vmatpush1.bf16.msra.mxu0 %v878
      %903 = vmatprep.subr.bf16.mxu0 0
      %904 = vmatpush1.bf16.msra.mxu0 %v879
      %905 = vmatprep.subr.bf16.mxu0 0
      %906 = vmatpush1.bf16.msra.mxu0 0
      %907 = vmatprep.subr.bf16.mxu0 0
      %908 = vmatpush1.bf16.msra.mxu0 0
      %909 = vmatprep.subr.bf16.mxu0 0
      %910 = vmatpush1.bf16.msra.mxu0 0
      %911 = vmatprep.subr.bf16.mxu0 0
      %912 = vmatpush1.bf16.msra.mxu0 0
      %913 = vmatprep.subr.bf16.mxu0 0
      %914 = vmatpush1.bf16.msra.mxu0 0
      %915 = vmatprep.subr.bf16.mxu0 0
      %916 = vmatpush1.bf16.msra.mxu0 0
      %917 = vmatprep.subr.bf16.mxu0 0
      %918 = vmatpush1.bf16.msra.mxu0 0
      %919 = vmatprep.subr.bf16.mxu0 0
      %920 = vmatpush1.bf16.msra.mxu0 0
      %921 = vmatprep.subr.bf16.mxu0 0
      %922 = vmatpush1.bf16.msra.mxu0 0
      %923 = vmatprep.subr.bf16.mxu0 0
      %924 = vmatpush1.bf16.msra.mxu0 0
      %925 = vmatprep.mubr.bf16.mxu0 0
      %926 = vmatmul.mubr.bf16.gmra.mrb[0].mxu0 %v888
      %v927 = vpop.f32.mrb[0].mxu0
      %v928 = vadd.f32 %v849, %v927
      %v929 = vpop.f32.mrb[0].mxu0
      %v930 = vpop.f32.mrb[0].mxu0
      %v931 = vadd.f32 %v849, %v930
      %v932 = vpop.f32.mrb[0].mxu0
      %933 = vmatprep.mubr.bf16.mxu0 0
      %934 = vmatmul.mubr.bf16.gmra.mrb[0].mxu0 %v891
      %v935 = vpop.f32.mrb[0].mxu0
      %v936 = vadd.f32 %v849, %v935
      %v937 = vpop.f32.mrb[0].mxu0
      %v938 = vpop.f32.mrb[0].mxu0
      %v939 = vadd.f32 %v849, %v938
      %v940 = vpop.f32.mrb[0].mxu0
      %941 = vdwg.mxu0
      %v942 = vsel %vm626, %v928, 0.0
      %v943 = vsel %vm626, %v931, 0.0
      %v944 = vadd.f32 %v942, %v943
      %v945 = vsel %vm626, %v936, 0.0
      %v946 = vadd.f32 %v944, %v945
      %v947 = vsel %vm626, %v939, 0.0
      %v948 = vadd.f32 %v946, %v947
      %v949 = vrot.slane %v948, 4
      %v950 = vadd.f32 %v948, %v949
      %v951 = vrot.slane %v950, 2
      %v952 = vadd.f32 %v950, %v951
      %v953 = vrot.slane %v952, 1
      %v954 = vadd.f32 %v952, %v953
      %v955 = vmul.f32 %v928, %v928
      %v956 = vmul.f32 %v931, %v931
      %v957 = vmul.f32 %v936, %v936
      %v958 = vmul.f32 %v939, %v939
      %v959 = vsel %vm626, %v955, 0.0
      %v960 = vsel %vm626, %v956, 0.0
      %v961 = vadd.f32 %v959, %v960
      %v962 = vsel %vm626, %v957, 0.0
      %v963 = vadd.f32 %v961, %v962
      %v964 = vsel %vm626, %v958, 0.0
      %v965 = vadd.f32 %v963, %v964
      %v966 = vrot.slane %v965, 4
      %v967 = vadd.f32 %v965, %v966
      %v968 = vrot.slane %v967, 2
      %v969 = vadd.f32 %v967, %v968
      %v970 = vrot.slane %v969, 1
      %v971 = vadd.f32 %v969, %v970
      %v972 = vsel %vm626, %v954, 0.0
      %973 = vadd.xlane.f32.xlu0 %v972
      %v974 = vpop.xlane.xlu0 %973
      %v975 = vmul.f32 %v974, %v660
      %v976 = vsel %vm626, %v971, 0.0
      %977 = vadd.xlane.f32.xlu0 %v976
      %v978 = vpop.xlane.xlu0 %977
      %v979 = vmul.f32 %v978, %v660
      %v980 = vmul.f32 %v975, %v975
      %v981 = vsub.f32 %v979, %v980
      %v982 = vadd.f32 %v981, 1e-05
      %v983 = vrsqrt.pop %v982
      %v984 = vmul.f32 %v983, %v802
      %v985 = vlaneseq
      %v986 = vshrl.u32 %v985, 7
      %v987 = vsub.s32 1, %v986
      %v988 = vrot.slane %v984, %v987
      %v989 = vmul.f32 %v928, %v988
      %v990 = vmul.f32 %v931, %v988
      %v991 = vmul.f32 %v936, %v988
      %v992 = vmul.f32 %v939, %v988
      %v993 = vmul.f32 %v975, %v984
      %v995 = vrot.slane %v993, 7
      %v997 = vsub.f32 %v802, %v995
      %v998 = vlaneseq
      %v999 = vshrl.u32 %v998, 7
      %v1000 = vsub.s32 2, %v999
      %v1001 = vrot.slane %v997, %v1000
      %v1002 = vadd.f32 %v989, %v1001
      %v1003 = vadd.f32 %v990, %v1001
      %v1004 = vadd.f32 %v991, %v1001
      %v1005 = vadd.f32 %v992, %v1001
      %v1006 = vadd.f32 %v1002, %v762
      %v1007 = vadd.f32 %v1003, %v763
      %v1008 = vadd.f32 %v1004, %v764
      %v1009 = vadd.f32 %v1005, %v765
      %v1010 = vmax.f32 %v1006, 0.0
      %v1011 = vmax.f32 %v1007, 0.0
      %v1012 = vmax.f32 %v1008, 0.0
      %v1013 = vmax.f32 %v1009, 0.0
      %v1014 = vrot.slane %v1010, 7
      %v1015 = vrot.slane %v1011, 7
      %v1016 = vrot.slane %v1012, 7
      %v1017 = vrot.slane %v1013, 7
      %v1018 = vsel %vm484, %v1016, %v1017
      %v1019 = vsel %vm484, %v1015, %v1016
      %v1020 = vsel %vm484, %v1014, %v1015
      %v1021 = vsel %vm484, %v1017, %v1014
      %v1022 = vsel %vm476, 0.0, %v1021
      %v1023 = vsel %vm477, 0.0, %v1020
      %v1024 = vsel %vm478, 0.0, %v1019
      %v1025 = vsel %vm479, 0.0, %v1018
      %v1026 = vrot.slane %v1010, 1
      %v1027 = vrot.slane %v1011, 1
      %v1028 = vrot.slane %v1012, 1
      %v1029 = vrot.slane %v1013, 1
      %v1030 = vsel %vm501, %v1028, %v1029
      %v1031 = vsel %vm501, %v1027, %v1028
      %v1032 = vsel %vm501, %v1026, %v1027
      %v1033 = vsel %vm501, %v1029, %v1026
      %v1034 = vsel %vm493, 0.0, %v1032
      %v1035 = vsel %vm494, 0.0, %v1031
      %v1036 = vsel %vm495, 0.0, %v1030
      %v1037 = vsel %vm496, 0.0, %v1033
      %v1038 = vld [vmem:[%s6] sm:$0xf]
      %v1039 = vld [vmem:[%s6 + $0x4] sm:$0xf]
      %v1040 = vld [vmem:[%s6 + $0x8] sm:$0xf]
      %v1041 = vld [vmem:[%s6 + $0xc] sm:$0xf]
      %v1042 = vld [vmem:[%s6 + $0x10] sm:$0xf]
      %v1043 = vld [vmem:[%s6 + $0x14] sm:$0xf]
      %v1044 = vld [vmem:[%s6 + $0x18] sm:$0xf]
      %v1045 = vld [vmem:[%s6 + $0x1c] sm:$0xf]
      %v1046 = vld [vmem:[%s7] sm:$0xf]
      %v1047 = vld [vmem:[%s7 + $0x4] sm:$0xf]
      %v1048 = vld [vmem:[%s7 + $0x8] sm:$0xf]
      %v1049 = vld [vmem:[%s7 + $0xc] sm:$0xf]
      %v1050 = vld [vmem:[%s7 + $0x10] sm:$0xf]
      %v1051 = vld [vmem:[%s7 + $0x14] sm:$0xf]
      %v1052 = vld [vmem:[%s7 + $0x18] sm:$0xf]
      %v1053 = vld [vmem:[%s7 + $0x1c] sm:$0xf]
      %v1054 = vld [vmem:[%s8] sm:$0x1]
      %1059 = vrot.lane.b32.xlu0 %v1010, 32
      %v1060 = vpop.permute.xlu0 %1059
      %1061 = vrot.lane.b32.xlu0 %v1011, 32
      %v1062 = vpop.permute.xlu0 %1061
      %1063 = vrot.lane.b32.xlu0 %v1012, 32
      %v1064 = vpop.permute.xlu0 %1063
      %1065 = vrot.lane.b32.xlu0 %v1013, 32
      %v1066 = vpop.permute.xlu0 %1065
      %v1071 = vsel %vm626, %v1022, %v1060
      %v1072 = vsel %vm626, %v1023, %v1062
      %v1073 = vsel %vm626, %v1024, %v1064
      %v1074 = vsel %vm626, %v1025, %v1066
      %v1075 = vpack.c.bf16 %v1072, %v1071
      %v1076 = vpack.c.bf16 %v1074, %v1073
      %v1078 = vlaneseq
      %v1079 = vshrl.u32 %v1078, 7
      %v1080 = vsub.s32 0, %v1079
      %v1081 = vrot.slane %v1054, %v1080
      %v1091 = vunpack.c.l.b16 %v1038
      %v1092 = vunpack.c.l.b16 %v1039
      %v1093 = vunpack.c.l.b16 %v1040
      %v1094 = vunpack.c.l.b16 %v1041
      %v1095 = vunpack.c.l.b16 %v1042
      %v1096 = vunpack.c.l.b16 %v1043
      %v1097 = vunpack.c.l.b16 %v1044
      %v1098 = vunpack.c.l.b16 %v1045
      %v1099 = vpack.c.b16 %v1092, %v1091
      %v1100 = vpack.c.b16 %v1094, %v1093
      %v1101 = vpack.c.b16 %v1096, %v1095
      %v1102 = vpack.c.b16 %v1098, %v1097
      %v1108 = vsel %vm839, %v1075, 0
      %v1111 = vsel %vm839, %v1076, 0
      %1113 = vmatprep.subr.bf16.mxu0 0
      %1114 = vmatpush1.bf16.msra.mxu0 %v1099
      %1115 = vmatprep.subr.bf16.mxu0 0
      %1116 = vmatpush1.bf16.msra.mxu0 %v1100
      %1117 = vmatprep.subr.bf16.mxu0 0
      %1118 = vmatpush1.bf16.msra.mxu0 %v1101
      %1119 = vmatprep.subr.bf16.mxu0 0
      %1120 = vmatpush1.bf16.msra.mxu0 %v1102
      %1121 = vmatprep.subr.bf16.mxu0 0
      %1122 = vmatpush1.bf16.msra.mxu0 0
      %1123 = vmatprep.subr.bf16.mxu0 0
      %1124 = vmatpush1.bf16.msra.mxu0 0
      %1125 = vmatprep.subr.bf16.mxu0 0
      %1126 = vmatpush1.bf16.msra.mxu0 0
      %1127 = vmatprep.subr.bf16.mxu0 0
      %1128 = vmatpush1.bf16.msra.mxu0 0
      %1129 = vmatprep.subr.bf16.mxu0 0
      %1130 = vmatpush1.bf16.msra.mxu0 0
      %1131 = vmatprep.subr.bf16.mxu0 0
      %1132 = vmatpush1.bf16.msra.mxu0 0
      %1133 = vmatprep.subr.bf16.mxu0 0
      %1134 = vmatpush1.bf16.msra.mxu0 0
      %1135 = vmatprep.subr.bf16.mxu0 0
      %1136 = vmatpush1.bf16.msra.mxu0 0
      %1137 = vmatprep.subr.bf16.mxu0 0
      %1138 = vmatpush1.bf16.msra.mxu0 0
      %1139 = vmatprep.subr.bf16.mxu0 0
      %1140 = vmatpush1.bf16.msra.mxu0 0
      %1141 = vmatprep.subr.bf16.mxu0 0
      %1142 = vmatpush1.bf16.msra.mxu0 0
      %1143 = vmatprep.subr.bf16.mxu0 0
      %1144 = vmatpush1.bf16.msra.mxu0 0
      %1145 = vmatprep.mubr.bf16.mxu0 0
      %1146 = vmatmul.mubr.bf16.gmra.mrb[0].mxu0 %v1108
      %v1147 = vpop.f32.mrb[0].mxu0
      %v1148 = vadd.f32 %v1081, %v1147
      %v1149 = vpop.f32.mrb[0].mxu0
      %v1150 = vpop.f32.mrb[0].mxu0
      %v1151 = vadd.f32 %v1081, %v1150
      %v1152 = vpop.f32.mrb[0].mxu0
      %1153 = vmatprep.mubr.bf16.mxu0 0
      %1154 = vmatmul.mubr.bf16.gmra.mrb[0].mxu0 %v1111
      %v1155 = vpop.f32.mrb[0].mxu0
      %v1156 = vadd.f32 %v1081, %v1155
      %v1157 = vpop.f32.mrb[0].mxu0
      %v1158 = vpop.f32.mrb[0].mxu0
      %v1159 = vadd.f32 %v1081, %v1158
      %v1160 = vpop.f32.mrb[0].mxu0
      %1161 = vdwg.mxu0
      %1166 = vrot.lane.b32.xlu0 %v1034, 32
      %v1167 = vpop.permute.xlu0 %1166
      %1168 = vrot.lane.b32.xlu0 %v1035, 32
      %v1169 = vpop.permute.xlu0 %1168
      %1170 = vrot.lane.b32.xlu0 %v1036, 32
      %v1171 = vpop.permute.xlu0 %1170
      %1172 = vrot.lane.b32.xlu0 %v1037, 32
      %v1173 = vpop.permute.xlu0 %1172
      %v1178 = vsel %vm626, %v1010, %v1167
      %v1179 = vsel %vm626, %v1011, %v1169
      %v1180 = vsel %vm626, %v1012, %v1171
      %v1181 = vsel %vm626, %v1013, %v1173
      %v1182 = vpack.c.bf16 %v1179, %v1178
      %v1183 = vpack.c.bf16 %v1181, %v1180
      %v1192 = vunpack.c.l.b16 %v1046
      %v1193 = vunpack.c.l.b16 %v1047
      %v1194 = vunpack.c.l.b16 %v1048
      %v1195 = vunpack.c.l.b16 %v1049
      %v1196 = vunpack.c.l.b16 %v1050
      %v1197 = vunpack.c.l.b16 %v1051
      %v1198 = vunpack.c.l.b16 %v1052
      %v1199 = vunpack.c.l.b16 %v1053
      %v1200 = vpack.c.b16 %v1193, %v1192
      %v1201 = vpack.c.b16 %v1195, %v1194
      %v1202 = vpack.c.b16 %v1197, %v1196
      %v1203 = vpack.c.b16 %v1199, %v1198
      %v1209 = vsel %vm839, %v1182, 0
      %v1212 = vsel %vm839, %v1183, 0
      %1214 = vmatprep.subr.bf16.mxu0 0
      %1215 = vmatpush1.bf16.msra.mxu0 %v1200
      %1216 = vmatprep.subr.bf16.mxu0 0
      %1217 = vmatpush1.bf16.msra.mxu0 %v1201
      %1218 = vmatprep.subr.bf16.mxu0 0
      %1219 = vmatpush1.bf16.msra.mxu0 %v1202
      %1220 = vmatprep.subr.bf16.mxu0 0
      %1221 = vmatpush1.bf16.msra.mxu0 %v1203
      %1222 = vmatprep.subr.bf16.mxu0 0
      %1223 = vmatpush1.bf16.msra.mxu0 0
      %1224 = vmatprep.subr.bf16.mxu0 0
      %1225 = vmatpush1.bf16.msra.mxu0 0
      %1226 = vmatprep.subr.bf16.mxu0 0
      %1227 = vmatpush1.bf16.msra.mxu0 0
      %1228 = vmatprep.subr.bf16.mxu0 0
      %1229 = vmatpush1.bf16.msra.mxu0 0
      %1230 = vmatprep.subr.bf16.mxu0 0
      %1231 = vmatpush1.bf16.msra.mxu0 0
      %1232 = vmatprep.subr.bf16.mxu0 0
      %1233 = vmatpush1.bf16.msra.mxu0 0
      %1234 = vmatprep.subr.bf16.mxu0 0
      %1235 = vmatpush1.bf16.msra.mxu0 0
      %1236 = vmatprep.subr.bf16.mxu0 0
      %1237 = vmatpush1.bf16.msra.mxu0 0
      %1238 = vmatprep.subr.bf16.mxu0 0
      %1239 = vmatpush1.bf16.msra.mxu0 0
      %1240 = vmatprep.subr.bf16.mxu0 0
      %1241 = vmatpush1.bf16.msra.mxu0 0
      %1242 = vmatprep.subr.bf16.mxu0 0
      %1243 = vmatpush1.bf16.msra.mxu0 0
      %1244 = vmatprep.subr.bf16.mxu0 0
      %1245 = vmatpush1.bf16.msra.mxu0 0
      %1246 = vmatprep.mubr.bf16.mxu0 0
      %1247 = vmatmul.mubr.bf16.gmra.mrb[0].mxu0 %v1209
      %v1248 = vpop.f32.mrb[0].mxu0
      %v1249 = vadd.f32 %v1081, %v1248
      %v1250 = vpop.f32.mrb[0].mxu0
      %v1251 = vpop.f32.mrb[0].mxu0
      %v1252 = vadd.f32 %v1081, %v1251
      %v1253 = vpop.f32.mrb[0].mxu0
      %1254 = vmatprep.mubr.bf16.mxu0 0
      %1255 = vmatmul.mubr.bf16.gmra.mrb[0].mxu0 %v1212
      %v1256 = vpop.f32.mrb[0].mxu0
      %v1257 = vadd.f32 %v1081, %v1256
      %v1258 = vpop.f32.mrb[0].mxu0
      %v1259 = vpop.f32.mrb[0].mxu0
      %v1260 = vadd.f32 %v1081, %v1259
      %v1261 = vpop.f32.mrb[0].mxu0
      %1262 = vdwg.mxu0
      %v1263 = vrot.slane %v1249, 7
      %v1264 = vrot.slane %v1252, 7
      %v1265 = vrot.slane %v1257, 7
      %v1266 = vrot.slane %v1260, 7
      %v1267 = vsel %vm484, %v1265, %v1266
      %v1268 = vsel %vm484, %v1264, %v1265
      %v1269 = vsel %vm484, %v1263, %v1264
      %v1270 = vsel %vm484, %v1266, %v1263
      %v1271 = vsel %vm476, 0.0, %v1270
      %v1272 = vsel %vm477, 0.0, %v1269
      %v1273 = vsel %vm478, 0.0, %v1268
      %v1274 = vsel %vm479, 0.0, %v1267
      %v1275 = vrot.slane %v1148, 1
      %v1276 = vrot.slane %v1151, 1
      %v1277 = vrot.slane %v1156, 1
      %v1278 = vrot.slane %v1159, 1
      %v1279 = vsel %vm501, %v1277, %v1278
      %v1280 = vsel %vm501, %v1276, %v1277
      %v1281 = vsel %vm501, %v1275, %v1276
      %v1282 = vsel %vm501, %v1278, %v1275
      %v1283 = vsel %vm493, 0.0, %v1281
      %v1284 = vsel %vm494, 0.0, %v1280
      %v1285 = vsel %vm495, 0.0, %v1279
      %v1286 = vsel %vm496, 0.0, %v1282
      %v1287 = vld [vmem:[%s9] sm:$0xf]
      %v1288 = vld [vmem:[%s9 + $0x4] sm:$0xf]
      %v1289 = vld [vmem:[%s9 + $0x8] sm:$0xf]
      %v1290 = vld [vmem:[%s9 + $0xc] sm:$0xf]
      %v1291 = vld [vmem:[%s9 + $0x10] sm:$0xf]
      %v1292 = vld [vmem:[%s9 + $0x14] sm:$0xf]
      %v1293 = vld [vmem:[%s9 + $0x18] sm:$0xf]
      %v1294 = vld [vmem:[%s9 + $0x1c] sm:$0xf]
      %v1295 = vld [vmem:[%s9 + $0x20] sm:$0xf]
      %v1296 = vld [vmem:[%s9 + $0x24] sm:$0xf]
      %v1297 = vld [vmem:[%s9 + $0x28] sm:$0xf]
      %v1298 = vld [vmem:[%s9 + $0x2c] sm:$0xf]
      %v1299 = vld [vmem:[%s10] sm:$0x7]
      %1308 = vrot.lane.b32.xlu0 %v1148, 32
      %v1309 = vpop.permute.xlu0 %1308
      %1310 = vrot.lane.b32.xlu0 %v1151, 32
      %v1311 = vpop.permute.xlu0 %1310
      %1312 = vrot.lane.b32.xlu0 %v1156, 32
      %v1313 = vpop.permute.xlu0 %1312
      %1314 = vrot.lane.b32.xlu0 %v1159, 32
      %v1315 = vpop.permute.xlu0 %1314
      %1316 = vrot.lane.b32.xlu0 %v1249, 32
      %v1317 = vpop.permute.xlu0 %1316
      %1318 = vrot.lane.b32.xlu0 %v1252, 32
      %v1319 = vpop.permute.xlu0 %1318
      %1320 = vrot.lane.b32.xlu0 %v1257, 32
      %v1321 = vpop.permute.xlu0 %1320
      %1322 = vrot.lane.b32.xlu0 %v1260, 32
      %v1323 = vpop.permute.xlu0 %1322
      %1336 = vrot.lane.b32.xlu0 %v1249, 64
      %v1337 = vpop.permute.xlu0 %1336
      %1338 = vrot.lane.b32.xlu0 %v1252, 64
      %v1339 = vpop.permute.xlu0 %1338
      %1340 = vrot.lane.b32.xlu0 %v1257, 64
      %v1341 = vpop.permute.xlu0 %1340
      %1342 = vrot.lane.b32.xlu0 %v1260, 64
      %v1343 = vpop.permute.xlu0 %1342
      %1344 = vrot.lane.b32.xlu0 %v1283, 64
      %v1345 = vpop.permute.xlu0 %1344
      %1346 = vrot.lane.b32.xlu0 %v1284, 64
      %v1347 = vpop.permute.xlu0 %1346
      %1348 = vrot.lane.b32.xlu0 %v1285, 64
      %v1349 = vpop.permute.xlu0 %1348
      %1350 = vrot.lane.b32.xlu0 %v1286, 64
      %v1351 = vpop.permute.xlu0 %1350
      %v1360 = vsel %vm626, %v1271, %v1309
      %v1361 = vsel %vm626, %v1272, %v1311
      %v1362 = vsel %vm626, %v1273, %v1313
      %v1363 = vsel %vm626, %v1274, %v1315
      %v1364 = vsel %vm626, %v1148, %v1317
      %v1365 = vsel %vm626, %v1151, %v1319
      %v1366 = vsel %vm626, %v1156, %v1321
      %v1367 = vsel %vm626, %v1159, %v1323
      %v1368 = vsel %vm839, %v1360, %v1337
      %v1369 = vsel %vm839, %v1361, %v1339
      %v1370 = vsel %vm839, %v1362, %v1341
      %v1371 = vsel %vm839, %v1363, %v1343
      %v1372 = vsel %vm839, %v1364, %v1345
      %v1373 = vsel %vm839, %v1365, %v1347
      %v1374 = vsel %vm839, %v1366, %v1349
      %v1375 = vsel %vm839, %v1367, %v1351
      %v1376 = vpack.c.bf16 %v1369, %v1368
      %v1377 = vpack.c.bf16 %v1371, %v1370
      %v1378 = vpack.c.bf16 %v1373, %v1372
      %v1379 = vpack.c.bf16 %v1375, %v1374
      %v1380 = vlaneseq
      %v1381 = vshrl.u32 %v1380, 7
      %v1382 = vsub.s32 0, %v1381
      %v1383 = vrot.slane %v1299, %v1382
      %v1396 = vunpack.c.l.b16 %v1287
      %v1397 = vunpack.c.l.b16 %v1288
      %v1398 = vunpack.c.l.b16 %v1289
      %v1399 = vunpack.c.l.b16 %v1290
      %v1400 = vunpack.c.l.b16 %v1291
      %v1401 = vunpack.c.l.b16 %v1292
      %v1402 = vunpack.c.l.b16 %v1293
      %v1403 = vunpack.c.l.b16 %v1294
      %v1404 = vunpack.c.l.b16 %v1295
      %v1405 = vunpack.c.l.b16 %v1296
      %v1406 = vunpack.c.l.b16 %v1297
      %v1407 = vunpack.c.l.b16 %v1298
      %v1408 = vpack.c.b16 %v1397, %v1396
      %v1409 = vpack.c.b16 %v1399, %v1398
      %v1410 = vpack.c.b16 %v1401, %v1400
      %v1411 = vpack.c.b16 %v1403, %v1402
      %v1412 = vpack.c.b16 %v1405, %v1404
      %v1413 = vpack.c.b16 %v1407, %v1406
      %v1421 = vsel %vm886, %v1376, 0
      %v1424 = vsel %vm886, %v1377, 0
      %v1427 = vsel %vm886, %v1378, 0
      %v1430 = vsel %vm886, %v1379, 0
      %1432 = vmatprep.subr.bf16.mxu0 0
      %1433 = vmatpush1.bf16.msra.mxu0 %v1408
      %1434 = vmatprep.subr.bf16.mxu0 0
      %1435 = vmatpush1.bf16.msra.mxu0 %v1409
      %1436 = vmatprep.subr.bf16.mxu0 0
      %1437 = vmatpush1.bf16.msra.mxu0 %v1410
      %1438 = vmatprep.subr.bf16.mxu0 0
      %1439 = vmatpush1.bf16.msra.mxu0 %v1411
      %1440 = vmatprep.subr.bf16.mxu0 0
      %1441 = vmatpush1.bf16.msra.mxu0 %v1412
      %1442 = vmatprep.subr.bf16.mxu0 0
      %1443 = vmatpush1.bf16.msra.mxu0 %v1413
      %1444 = vmatprep.subr.bf16.mxu0 0
      %1445 = vmatpush1.bf16.msra.mxu0 0
      %1446 = vmatprep.subr.bf16.mxu0 0
      %1447 = vmatpush1.bf16.msra.mxu0 0
      %1448 = vmatprep.subr.bf16.mxu0 0
      %1449 = vmatpush1.bf16.msra.mxu0 0
      %1450 = vmatprep.subr.bf16.mxu0 0
      %1451 = vmatpush1.bf16.msra.mxu0 0
      %1452 = vmatprep.subr.bf16.mxu0 0
      %1453 = vmatpush1.bf16.msra.mxu0 0
      %1454 = vmatprep.subr.bf16.mxu0 0
      %1455 = vmatpush1.bf16.msra.mxu0 0
      %1456 = vmatprep.subr.bf16.mxu0 0
      %1457 = vmatpush1.bf16.msra.mxu0 0
      %1458 = vmatprep.subr.bf16.mxu0 0
      %1459 = vmatpush1.bf16.msra.mxu0 0
      %1460 = vmatprep.subr.bf16.mxu0 0
      %1461 = vmatpush1.bf16.msra.mxu0 0
      %1462 = vmatprep.subr.bf16.mxu0 0
      %1463 = vmatpush1.bf16.msra.mxu0 0
      %1464 = vmatprep.mubr.bf16.mxu0 0
      %1465 = vmatmul.mubr.bf16.gmra.mrb[0].mxu0 %v1421
      %v1466 = vpop.f32.mrb[0].mxu0
      %v1467 = vadd.f32 %v1383, %v1466
      %v1468 = vpop.f32.mrb[0].mxu0
      %v1469 = vpop.f32.mrb[0].mxu0
      %v1470 = vadd.f32 %v1383, %v1469
      %v1471 = vpop.f32.mrb[0].mxu0
      %1472 = vmatprep.mubr.bf16.mxu0 0
      %1473 = vmatmul.mubr.bf16.gmra.mrb[0].mxu0 %v1424
      %v1474 = vpop.f32.mrb[0].mxu0
      %v1475 = vadd.f32 %v1383, %v1474
      %v1476 = vpop.f32.mrb[0].mxu0
      %v1477 = vpop.f32.mrb[0].mxu0
      %v1478 = vadd.f32 %v1383, %v1477
      %v1479 = vpop.f32.mrb[0].mxu0
      %1480 = vmatprep.mubr.bf16.mxu0 0
      %1481 = vmatmul.mubr.bf16.gmra.mrb[0].mxu0 %v1427
      %v1482 = vpop.f32.mrb[0].mxu0
      %v1483 = vadd.f32 %v1383, %v1482
      %v1484 = vpop.f32.mrb[0].mxu0
      %v1485 = vpop.f32.mrb[0].mxu0
      %v1486 = vadd.f32 %v1383, %v1485
      %v1487 = vpop.f32.mrb[0].mxu0
      %1488 = vmatprep.mubr.bf16.mxu0 0
      %1489 = vmatmul.mubr.bf16.gmra.mrb[0].mxu0 %v1430
      %v1490 = vpop.f32.mrb[0].mxu0
      %v1491 = vadd.f32 %v1383, %v1490
      %v1492 = vpop.f32.mrb[0].mxu0
      %v1493 = vpop.f32.mrb[0].mxu0
      %v1494 = vadd.f32 %v1383, %v1493
      %v1495 = vpop.f32.mrb[0].mxu0
      %1496 = vdwg.mxu0
      %v1497 = vsel %vm626, %v1467, 0.0
      %v1498 = vsel %vm626, %v1470, 0.0
      %v1499 = vadd.f32 %v1497, %v1498
      %v1500 = vsel %vm626, %v1475, 0.0
      %v1501 = vadd.f32 %v1499, %v1500
      %v1502 = vsel %vm626, %v1478, 0.0
      %v1503 = vadd.f32 %v1501, %v1502
      %v1504 = vsel %vm626, %v1483, 0.0
      %v1505 = vadd.f32 %v1503, %v1504
      %v1506 = vsel %vm626, %v1486, 0.0
      %v1507 = vadd.f32 %v1505, %v1506
      %v1508 = vsel %vm626, %v1491, 0.0
      %v1509 = vadd.f32 %v1507, %v1508
      %v1510 = vsel %vm626, %v1494, 0.0
      %v1511 = vadd.f32 %v1509, %v1510
      %v1512 = vrot.slane %v1511, 4
      %v1513 = vadd.f32 %v1511, %v1512
      %v1514 = vrot.slane %v1513, 2
      %v1515 = vadd.f32 %v1513, %v1514
      %v1516 = vrot.slane %v1515, 1
      %v1517 = vadd.f32 %v1515, %v1516
      %v1518 = vmul.f32 %v1467, %v1467
      %v1519 = vmul.f32 %v1470, %v1470
      %v1520 = vmul.f32 %v1475, %v1475
      %v1521 = vmul.f32 %v1478, %v1478
      %v1522 = vmul.f32 %v1483, %v1483
      %v1523 = vmul.f32 %v1486, %v1486
      %v1524 = vmul.f32 %v1491, %v1491
      %v1525 = vmul.f32 %v1494, %v1494
      %v1526 = vsel %vm626, %v1518, 0.0
      %v1527 = vsel %vm626, %v1519, 0.0
      %v1528 = vadd.f32 %v1526, %v1527
      %v1529 = vsel %vm626, %v1520, 0.0
      %v1530 = vadd.f32 %v1528, %v1529
      %v1531 = vsel %vm626, %v1521, 0.0
      %v1532 = vadd.f32 %v1530, %v1531
      %v1533 = vsel %vm626, %v1522, 0.0
      %v1534 = vadd.f32 %v1532, %v1533
      %v1535 = vsel %vm626, %v1523, 0.0
      %v1536 = vadd.f32 %v1534, %v1535
      %v1537 = vsel %vm626, %v1524, 0.0
      %v1538 = vadd.f32 %v1536, %v1537
      %v1539 = vsel %vm626, %v1525, 0.0
      %v1540 = vadd.f32 %v1538, %v1539
      %v1541 = vrot.slane %v1540, 4
      %v1542 = vadd.f32 %v1540, %v1541
      %v1543 = vrot.slane %v1542, 2
      %v1544 = vadd.f32 %v1542, %v1543
      %v1545 = vrot.slane %v1544, 1
      %v1546 = vadd.f32 %v1544, %v1545
      %v1547 = vsel %vm626, %v1517, 0.0
      %1548 = vadd.xlane.f32.xlu0 %v1547
      %v1549 = vpop.xlane.xlu0 %1548
      %v1550 = vrcp.pop 2048.0
      %v1551 = vmul.f32 %v1549, %v1550
      %v1552 = vsel %vm626, %v1546, 0.0
      %1553 = vadd.xlane.f32.xlu0 %v1552
      %v1554 = vpop.xlane.xlu0 %1553
      %v1555 = vmul.f32 %v1554, %v1550
      %v1556 = vmul.f32 %v1551, %v1551
      %v1557 = vsub.f32 %v1555, %v1556
      %v1558 = vadd.f32 %v1557, 1e-05
      %v1559 = vrsqrt.pop %v1558
      %v1560 = vmul.f32 %v1559, %v1299
      %v1561 = vlaneseq
      %v1562 = vshrl.u32 %v1561, 7
      %v1563 = vsub.s32 1, %v1562
      %v1564 = vrot.slane %v1560, %v1563
      %v1565 = vmul.f32 %v1467, %v1564
      %v1566 = vmul.f32 %v1470, %v1564
      %v1567 = vmul.f32 %v1475, %v1564
      %v1568 = vmul.f32 %v1478, %v1564
      %v1569 = vmul.f32 %v1483, %v1564
      %v1570 = vmul.f32 %v1486, %v1564
      %v1571 = vmul.f32 %v1491, %v1564
      %v1572 = vmul.f32 %v1494, %v1564
      %v1573 = vmul.f32 %v1551, %v1560
      %v1575 = vrot.slane %v1573, 7
      %v1577 = vsub.f32 %v1299, %v1575
      %v1578 = vlaneseq
      %v1579 = vshrl.u32 %v1578, 7
      %v1580 = vsub.s32 2, %v1579
      %v1581 = vrot.slane %v1577, %v1580
      %v1582 = vadd.f32 %v1565, %v1581
      %v1583 = vadd.f32 %v1566, %v1581
      %v1584 = vadd.f32 %v1567, %v1581
      %v1585 = vadd.f32 %v1568, %v1581
      %v1586 = vadd.f32 %v1569, %v1581
      %v1587 = vadd.f32 %v1570, %v1581
      %v1588 = vadd.f32 %v1571, %v1581
      %v1589 = vadd.f32 %v1572, %v1581
      %v1590 = vadd.f32 %v1582, %v1148
      %v1591 = vadd.f32 %v1583, %v1151
      %v1592 = vadd.f32 %v1584, %v1156
      %v1593 = vadd.f32 %v1585, %v1159
      %v1594 = vadd.f32 %v1586, %v1249
      %v1595 = vadd.f32 %v1587, %v1252
      %v1596 = vadd.f32 %v1588, %v1257
      %v1597 = vadd.f32 %v1589, %v1260
      %v1598 = vmax.f32 %v1590, 0.0
      %v1599 = vmax.f32 %v1591, 0.0
      %v1600 = vmax.f32 %v1592, 0.0
      %v1601 = vmax.f32 %v1593, 0.0
      %v1602 = vmax.f32 %v1594, 0.0
      %v1603 = vmax.f32 %v1595, 0.0
      %v1604 = vmax.f32 %v1596, 0.0
      %v1605 = vmax.f32 %v1597, 0.0
      %v1606 = vrot.slane %v1602, 7
      %v1607 = vrot.slane %v1603, 7
      %v1608 = vrot.slane %v1604, 7
      %v1609 = vrot.slane %v1605, 7
      %v1610 = vsel %vm484, %v1608, %v1609
      %v1611 = vsel %vm484, %v1607, %v1608
      %v1612 = vsel %vm484, %v1606, %v1607
      %v1613 = vsel %vm484, %v1609, %v1606
      %v1614 = vsel %vm476, 0.0, %v1613
      %v1615 = vsel %vm477, 0.0, %v1612
      %v1616 = vsel %vm478, 0.0, %v1611
      %v1617 = vsel %vm479, 0.0, %v1610
      %v1618 = vrot.slane %v1598, 1
      %v1619 = vrot.slane %v1599, 1
      %v1620 = vrot.slane %v1600, 1
      %v1621 = vrot.slane %v1601, 1
      %v1622 = vsel %vm501, %v1620, %v1621
      %v1623 = vsel %vm501, %v1619, %v1620
      %v1624 = vsel %vm501, %v1618, %v1619
      %v1625 = vsel %vm501, %v1621, %v1618
      %v1626 = vsel %vm493, 0.0, %v1624
      %v1627 = vsel %vm494, 0.0, %v1623
      %v1628 = vsel %vm495, 0.0, %v1622
      %v1629 = vsel %vm496, 0.0, %v1625
      %v1630 = vld [vmem:[%s11] sm:$0xf]
      %v1631 = vld [vmem:[%s11 + $0x4] sm:$0xf]
      %v1632 = vld [vmem:[%s11 + $0x8] sm:$0xf]
      %v1633 = vld [vmem:[%s11 + $0xc] sm:$0xf]
      %v1634 = vld [vmem:[%s11 + $0x10] sm:$0xf]
      %v1635 = vld [vmem:[%s11 + $0x14] sm:$0xf]
      %v1636 = vld [vmem:[%s11 + $0x18] sm:$0xf]
      %v1637 = vld [vmem:[%s11 + $0x1c] sm:$0xf]
      %v1638 = vld [vmem:[%s12] sm:$0xf]
      %v1639 = vld [vmem:[%s12 + $0x4] sm:$0xf]
      %v1640 = vld [vmem:[%s12 + $0x8] sm:$0xf]
      %v1641 = vld [vmem:[%s12 + $0xc] sm:$0xf]
      %v1642 = vld [vmem:[%s12 + $0x10] sm:$0xf]
      %v1643 = vld [vmem:[%s12 + $0x14] sm:$0xf]
      %v1644 = vld [vmem:[%s12 + $0x18] sm:$0xf]
      %v1645 = vld [vmem:[%s12 + $0x1c] sm:$0xf]
      %v1646 = vld [vmem:[%s13] sm:$0x1]
      %1655 = vrot.lane.b32.xlu0 %v1598, 32
      %v1656 = vpop.permute.xlu0 %1655
      %1657 = vrot.lane.b32.xlu0 %v1599, 32
      %v1658 = vpop.permute.xlu0 %1657
      %1659 = vrot.lane.b32.xlu0 %v1600, 32
      %v1660 = vpop.permute.xlu0 %1659
      %1661 = vrot.lane.b32.xlu0 %v1601, 32
      %v1662 = vpop.permute.xlu0 %1661
      %1663 = vrot.lane.b32.xlu0 %v1602, 32
      %v1664 = vpop.permute.xlu0 %1663
      %1665 = vrot.lane.b32.xlu0 %v1603, 32
      %v1666 = vpop.permute.xlu0 %1665
      %1667 = vrot.lane.b32.xlu0 %v1604, 32
      %v1668 = vpop.permute.xlu0 %1667
      %1669 = vrot.lane.b32.xlu0 %v1605, 32
      %v1670 = vpop.permute.xlu0 %1669
      %v1679 = vsel %vm626, %v1614, %v1656
      %v1680 = vsel %vm626, %v1615, %v1658
      %v1681 = vsel %vm626, %v1616, %v1660
      %v1682 = vsel %vm626, %v1617, %v1662
      %v1683 = vsel %vm626, %v1598, %v1664
      %v1684 = vsel %vm626, %v1599, %v1666
      %v1685 = vsel %vm626, %v1600, %v1668
      %v1686 = vsel %vm626, %v1601, %v1670
      %v1687 = vpack.c.bf16 %v1680, %v1679
      %v1688 = vpack.c.bf16 %v1682, %v1681
      %v1689 = vpack.c.bf16 %v1684, %v1683
      %v1690 = vpack.c.bf16 %v1686, %v1685
      %v1692 = vlaneseq
      %v1693 = vshrl.u32 %v1692, 7
      %v1694 = vsub.s32 0, %v1693
      %v1695 = vrot.slane %v1646, %v1694
      %v1705 = vunpack.c.l.b16 %v1630
      %v1706 = vunpack.c.l.b16 %v1631
      %v1707 = vunpack.c.l.b16 %v1632
      %v1708 = vunpack.c.l.b16 %v1633
      %v1709 = vunpack.c.l.b16 %v1634
      %v1710 = vunpack.c.l.b16 %v1635
      %v1711 = vunpack.c.l.b16 %v1636
      %v1712 = vunpack.c.l.b16 %v1637
      %v1713 = vpack.c.b16 %v1706, %v1705
      %v1714 = vpack.c.b16 %v1708, %v1707
      %v1715 = vpack.c.b16 %v1710, %v1709
      %v1716 = vpack.c.b16 %v1712, %v1711
      %v1722 = vsel %vm839, %v1687, 0
      %v1725 = vsel %vm839, %v1688, 0
      %v1728 = vsel %vm839, %v1689, 0
      %v1731 = vsel %vm839, %v1690, 0
      %1733 = vmatprep.subr.bf16.mxu0 0
      %1734 = vmatpush1.bf16.msra.mxu0 %v1713
      %1735 = vmatprep.subr.bf16.mxu0 0
      %1736 = vmatpush1.bf16.msra.mxu0 %v1714
      %1737 = vmatprep.subr.bf16.mxu0 0
      %1738 = vmatpush1.bf16.msra.mxu0 %v1715
      %1739 = vmatprep.subr.bf16.mxu0 0
      %1740 = vmatpush1.bf16.msra.mxu0 %v1716
      %1741 = vmatprep.subr.bf16.mxu0 0
      %1742 = vmatpush1.bf16.msra.mxu0 0
      %1743 = vmatprep.subr.bf16.mxu0 0
      %1744 = vmatpush1.bf16.msra.mxu0 0
      %1745 = vmatprep.subr.bf16.mxu0 0
      %1746 = vmatpush1.bf16.msra.mxu0 0
      %1747 = vmatprep.subr.bf16.mxu0 0
      %1748 = vmatpush1.bf16.msra.mxu0 0
      %1749 = vmatprep.subr.bf16.mxu0 0
      %1750 = vmatpush1.bf16.msra.mxu0 0
      %1751 = vmatprep.subr.bf16.mxu0 0
      %1752 = vmatpush1.bf16.msra.mxu0 0
      %1753 = vmatprep.subr.bf16.mxu0 0
      %1754 = vmatpush1.bf16.msra.mxu0 0
      %1755 = vmatprep.subr.bf16.mxu0 0
      %1756 = vmatpush1.bf16.msra.mxu0 0
      %1757 = vmatprep.subr.bf16.mxu0 0
      %1758 = vmatpush1.bf16.msra.mxu0 0
      %1759 = vmatprep.subr.bf16.mxu0 0
      %1760 = vmatpush1.bf16.msra.mxu0 0
      %1761 = vmatprep.subr.bf16.mxu0 0
      %1762 = vmatpush1.bf16.msra.mxu0 0
      %1763 = vmatprep.subr.bf16.mxu0 0
      %1764 = vmatpush1.bf16.msra.mxu0 0
      %1765 = vmatprep.mubr.bf16.mxu0 0
      %1766 = vmatmul.mubr.bf16.gmra.mrb[0].mxu0 %v1722
      %v1767 = vpop.f32.mrb[0].mxu0
      %v1768 = vadd.f32 %v1695, %v1767
      %v1769 = vpop.f32.mrb[0].mxu0
      %v1770 = vpop.f32.mrb[0].mxu0
      %v1771 = vadd.f32 %v1695, %v1770
      %v1772 = vpop.f32.mrb[0].mxu0
      %1773 = vmatprep.mubr.bf16.mxu0 0
      %1774 = vmatmul.mubr.bf16.gmra.mrb[0].mxu0 %v1725
      %v1775 = vpop.f32.mrb[0].mxu0
      %v1776 = vadd.f32 %v1695, %v1775
      %v1777 = vpop.f32.mrb[0].mxu0
      %v1778 = vpop.f32.mrb[0].mxu0
      %v1779 = vadd.f32 %v1695, %v1778
      %v1780 = vpop.f32.mrb[0].mxu0
      %1781 = vmatprep.mubr.bf16.mxu0 0
      %1782 = vmatmul.mubr.bf16.gmra.mrb[0].mxu0 %v1728
      %v1783 = vpop.f32.mrb[0].mxu0
      %v1784 = vadd.f32 %v1695, %v1783
      %v1785 = vpop.f32.mrb[0].mxu0
      %v1786 = vpop.f32.mrb[0].mxu0
      %v1787 = vadd.f32 %v1695, %v1786
      %v1788 = vpop.f32.mrb[0].mxu0
      %1789 = vmatprep.mubr.bf16.mxu0 0
      %1790 = vmatmul.mubr.bf16.gmra.mrb[0].mxu0 %v1731
      %v1791 = vpop.f32.mrb[0].mxu0
      %v1792 = vadd.f32 %v1695, %v1791
      %v1793 = vpop.f32.mrb[0].mxu0
      %v1794 = vpop.f32.mrb[0].mxu0
      %v1795 = vadd.f32 %v1695, %v1794
      %v1796 = vpop.f32.mrb[0].mxu0
      %1797 = vdwg.mxu0
      %1802 = vrot.lane.b32.xlu0 %v1626, 32
      %v1803 = vpop.permute.xlu0 %1802
      %1804 = vrot.lane.b32.xlu0 %v1627, 32
      %v1805 = vpop.permute.xlu0 %1804
      %1806 = vrot.lane.b32.xlu0 %v1628, 32
      %v1807 = vpop.permute.xlu0 %1806
      %1808 = vrot.lane.b32.xlu0 %v1629, 32
      %v1809 = vpop.permute.xlu0 %1808
      %v1814 = vsel %vm626, %v1602, %v1803
      %v1815 = vsel %vm626, %v1603, %v1805
      %v1816 = vsel %vm626, %v1604, %v1807
      %v1817 = vsel %vm626, %v1605, %v1809
      %v1818 = vpack.c.bf16 %v1815, %v1814
      %v1819 = vpack.c.bf16 %v1817, %v1816
      %v1828 = vunpack.c.l.b16 %v1638
      %v1829 = vunpack.c.l.b16 %v1639
      %v1830 = vunpack.c.l.b16 %v1640
      %v1831 = vunpack.c.l.b16 %v1641
      %v1832 = vunpack.c.l.b16 %v1642
      %v1833 = vunpack.c.l.b16 %v1643
      %v1834 = vunpack.c.l.b16 %v1644
      %v1835 = vunpack.c.l.b16 %v1645
      %v1836 = vpack.c.b16 %v1829, %v1828
      %v1837 = vpack.c.b16 %v1831, %v1830
      %v1838 = vpack.c.b16 %v1833, %v1832
      %v1839 = vpack.c.b16 %v1835, %v1834
      %v1845 = vsel %vm839, %v1818, 0
      %v1848 = vsel %vm839, %v1819, 0
      %1850 = vmatprep.subr.bf16.mxu0 0
      %1851 = vmatpush1.bf16.msra.mxu0 %v1836
      %1852 = vmatprep.subr.bf16.mxu0 0
      %1853 = vmatpush1.bf16.msra.mxu0 %v1837
      %1854 = vmatprep.subr.bf16.mxu0 0
      %1855 = vmatpush1.bf16.msra.mxu0 %v1838
      %1856 = vmatprep.subr.bf16.mxu0 0
      %1857 = vmatpush1.bf16.msra.mxu0 %v1839
      %1858 = vmatprep.subr.bf16.mxu0 0
      %1859 = vmatpush1.bf16.msra.mxu0 0
      %1860 = vmatprep.subr.bf16.mxu0 0
      %1861 = vmatpush1.bf16.msra.mxu0 0
      %1862 = vmatprep.subr.bf16.mxu0 0
      %1863 = vmatpush1.bf16.msra.mxu0 0
      %1864 = vmatprep.subr.bf16.mxu0 0
      %1865 = vmatpush1.bf16.msra.mxu0 0
      %1866 = vmatprep.subr.bf16.mxu0 0
      %1867 = vmatpush1.bf16.msra.mxu0 0
      %1868 = vmatprep.subr.bf16.mxu0 0
      %1869 = vmatpush1.bf16.msra.mxu0 0
      %1870 = vmatprep.subr.bf16.mxu0 0
      %1871 = vmatpush1.bf16.msra.mxu0 0
      %1872 = vmatprep.subr.bf16.mxu0 0
      %1873 = vmatpush1.bf16.msra.mxu0 0
      %1874 = vmatprep.subr.bf16.mxu0 0
      %1875 = vmatpush1.bf16.msra.mxu0 0
      %1876 = vmatprep.subr.bf16.mxu0 0
      %1877 = vmatpush1.bf16.msra.mxu0 0
      %1878 = vmatprep.subr.bf16.mxu0 0
      %1879 = vmatpush1.bf16.msra.mxu0 0
      %1880 = vmatprep.subr.bf16.mxu0 0
      %1881 = vmatpush1.bf16.msra.mxu0 0
      %1882 = vmatprep.mubr.bf16.mxu0 0
      %1883 = vmatmul.mubr.bf16.gmra.mrb[0].mxu0 %v1728
      %v1884 = vpop.f32.mrb[0].mxu0
      %v1885 = vadd.f32 %v1695, %v1884
      %v1886 = vpop.f32.mrb[0].mxu0
      %v1887 = vpop.f32.mrb[0].mxu0
      %v1888 = vadd.f32 %v1695, %v1887
      %v1889 = vpop.f32.mrb[0].mxu0
      %1890 = vmatprep.mubr.bf16.mxu0 0
      %1891 = vmatmul.mubr.bf16.gmra.mrb[0].mxu0 %v1731
      %v1892 = vpop.f32.mrb[0].mxu0
      %v1893 = vadd.f32 %v1695, %v1892
      %v1894 = vpop.f32.mrb[0].mxu0
      %v1895 = vpop.f32.mrb[0].mxu0
      %v1896 = vadd.f32 %v1695, %v1895
      %v1897 = vpop.f32.mrb[0].mxu0
      %1898 = vmatprep.mubr.bf16.mxu0 0
      %1899 = vmatmul.mubr.bf16.gmra.mrb[0].mxu0 %v1845
      %v1900 = vpop.f32.mrb[0].mxu0
      %v1901 = vadd.f32 %v1695, %v1900
      %v1902 = vpop.f32.mrb[0].mxu0
      %v1903 = vpop.f32.mrb[0].mxu0
      %v1904 = vadd.f32 %v1695, %v1903
      %v1905 = vpop.f32.mrb[0].mxu0
      %1906 = vmatprep.mubr.bf16.mxu0 0
      %1907 = vmatmul.mubr.bf16.gmra.mrb[0].mxu0 %v1848
      %v1908 = vpop.f32.mrb[0].mxu0
      %v1909 = vadd.f32 %v1695, %v1908
      %v1910 = vpop.f32.mrb[0].mxu0
      %v1911 = vpop.f32.mrb[0].mxu0
      %v1912 = vadd.f32 %v1695, %v1911
      %v1913 = vpop.f32.mrb[0].mxu0
      %1914 = vdwg.mxu0
      %1915 = vxpose.xlu0.b32.start [1/16] %v1768, 128
      %1916 = vxpose.xlu0.b32.cont [2/16] %v1771, 128
      %1917 = vxpose.xlu0.b32.cont [3/16] %v1776, 128
      %1918 = vxpose.xlu0.b32.cont [4/16] %v1779, 128
      %1919 = vxpose.xlu0.b32.cont [5/16] %v1885, 128
      %1920 = vxpose.xlu0.b32.cont [6/16] %v1888, 128
      %1921 = vxpose.xlu0.b32.cont [7/16] %v1893, 128
      %1922 = vxpose.xlu0.b32.cont [8/16] %v1896, 128
      %1923 = vxpose.xlu0.b32.cont [9/16] %v1784, 128
      %1924 = vxpose.xlu0.b32.cont [10/16] %v1787, 128
      %1925 = vxpose.xlu0.b32.cont [11/16] %v1792, 128
      %1926 = vxpose.xlu0.b32.cont [12/16] %v1795, 128
      %1927 = vxpose.xlu0.b32.cont [13/16] %v1901, 128
      %1928 = vxpose.xlu0.b32.cont [14/16] %v1904, 128
      %1929 = vxpose.xlu0.b32.cont [15/16] %v1909, 128
      %1930 = vxpose.xlu0.b32.end [16/16] %v1912, 128
      %v1931 = vpop.trf.xlu0
      %v1932 = vpop.trf.xlu0
      %v1933 = vpop.trf.xlu0
      %v1934 = vpop.trf.xlu0
      %v1935 = vpop.trf.xlu0
      %v1936 = vpop.trf.xlu0
      %v1937 = vpop.trf.xlu0
      %v1938 = vpop.trf.xlu0
      %v1939 = vpop.trf.xlu0
      %v1940 = vpop.trf.xlu0
      %v1941 = vpop.trf.xlu0
      %v1942 = vpop.trf.xlu0
      %v1943 = vpop.trf.xlu0
      %v1944 = vpop.trf.xlu0
      %v1945 = vpop.trf.xlu0
      %v1946 = vpop.trf.xlu0
      %1947 = vst [vmem:[%s465] sm:$0x3] %v1931
      %p1948 = scmp.lt.s32.totalorder %s25, 1
      %s1949 = scalar_select %p1948, %s25, 1
      %s1950 = smul.addr %s1949, 2
      %s1951 = scalar_lea.vmem %s14, %s1950
      // Predicated region
      $region77: #{decoder_forward.1} parent=75 // pred_check
        %p1952 = pneg %p342
      $region78: #{decoder_forward.1} parent=75 // pred_check_branch
        %1954 = sbr.rel (%p1952) target = $region80
      $region79: #{decoder_forward.1} parent=75 // pred_region
        _
      $region80: #{decoder_forward.1} parent=75 // pred_fallthru
        _
    $region76: #{decoder_forward.1} parent=5 // pred_fallthru
      _
    %p1955 = scmp.le.s32.totalorder 2, %s20
    // Predicated region
    $region81: #{decoder_forward.1} parent=5 // pred_check
      %p1956 = pneg %p1955
    $region82: #{decoder_forward.1} parent=5 // pred_check_branch
      %1958 = sbr.rel (%p1956) target = $region84
    $region83: #{decoder_forward.1} parent=5 // pred_region
      %s1959 = ssub.s32 %s20, 2
      // Predicated region
      $region85: #{decoder_forward.1} parent=83 // pred_check
        %p1960 = pneg %p348
      $region86: #{decoder_forward.1} parent=83 // pred_check_branch
        %1962 = sbr.rel (%p1960) target = $region88
      $region87: #{decoder_forward.1} parent=83 // pred_region
        %p1963 = scmp.lt.s32.totalorder %s26, 1
        %s1964 = scalar_select %p1963, %s26, 1
        %s1965 = smul.addr %s1964, 2
        %s1966 = scalar_lea.vmem %s14, %s1965
      $region88: #{decoder_forward.1} parent=83 // pred_fallthru
        _
    $region84: #{decoder_forward.1} parent=5 // pred_fallthru
      _
  $region6: #{decoder_forward.1} parent=0 // loop_footer
    %s24 = sadd.s32 1, %s20
  $region7: #{decoder_forward.1} parent=0 // loop_footer_branch
    %19 = sbr.rel target = $region3
  $region8: #{decoder_forward.1} parent=0 // loop_exit
    _

</llo_original>
